<compile_context>
chip_gen: v7x
topology: tpu7x:2x2x1
jax: 0.10.0
libtpu: 0.0.40
codegen_flags: <defaults>
</compile_context>

<pallas_src>
import math
from functools import partial

import jax
import jax.numpy as jnp
from jax.experimental import pallas as pl
from jax.experimental.pallas import tpu as pltpu


def _varcor_attention_kernel(q_ref, k_ref, v_ref,
                             wq_ref, bq_ref, wk_ref, bk_ref,
                             wv_ref, bv_ref, wo_ref, bo_ref,
                             *refs, n_heads, output_attention, attn_dtype):
    if output_attention:
        out_ref, attn_ref, o_scr = refs
    else:
        out_ref, o_scr = refs
        attn_ref = None

    TB, D, dm = q_ref.shape
    HEk = wq_ref.shape[1]
    HEv = wv_ref.shape[1]
    Ek = HEk // n_heads
    Ev = HEv // n_heads
    scale = 1.0 / math.sqrt(Ek)

    # Flatten (TB, D) -> rows so each projection is a single large MXU matmul.
    q2 = q_ref[...].reshape(TB * D, dm)
    k2 = k_ref[...].reshape(TB * D, dm)
    v2 = v_ref[...].reshape(TB * D, dm)

    # Projections; softmax scale folded into Q (bias included -> correct).
    Q = (jnp.dot(q2, wq_ref[...], preferred_element_type=jnp.float32)
         + bq_ref[...]) * scale
    K = jnp.dot(k2, wk_ref[...], preferred_element_type=jnp.float32) + bk_ref[...]
    V = jnp.dot(v2, wv_ref[...], preferred_element_type=jnp.float32) + bv_ref[...]

    Q3 = Q.reshape(TB, D, HEk).astype(attn_dtype)
    K3 = K.reshape(TB, D, HEk).astype(attn_dtype)
    V3 = V.reshape(TB, D, HEv).astype(attn_dtype)

    # Small static head loop (n_heads is tiny); softmax math stays f32.
    for h in range(n_heads):
        Qh = Q3[:, :, h * Ek:(h + 1) * Ek]                       # (TB, D, Ek)
        Kh = K3[:, :, h * Ek:(h + 1) * Ek]                       # (TB, S=D, Ek)
        Vh = V3[:, :, h * Ev:(h + 1) * Ev]                       # (TB, S=D, Ev)

        s = jnp.einsum("bde,bse->bds", Qh, Kh,
                       preferred_element_type=jnp.float32)       # (TB, D, D)
        m = jnp.max(s, axis=-1, keepdims=True)
        e = jnp.exp(s - m)
        denom = jnp.sum(e, axis=-1, keepdims=True)
        A = e * pl.reciprocal(denom, approx=True)                # softmax (f32)

        if output_attention:
            attn_ref[:, h] = A

        Oh = jnp.einsum("bds,bse->bde", A.astype(attn_dtype), Vh,
                        preferred_element_type=jnp.float32)      # (TB, D, Ev)
        o_scr[:, :, h * Ev:(h + 1) * Ev] = Oh

    # Single output projection over the full head dimension (K = HEv).
    O2 = o_scr[...].reshape(TB * D, HEv)
    out = jnp.dot(O2, wo_ref[...], preferred_element_type=jnp.float32) + bo_ref[...]
    out_ref[...] = out.reshape(TB, D, dm).astype(out_ref.dtype)


def varcor_attention_layer(queries, keys, values, params, n_heads, *,
                           output_attention=True, batch_tile=None,
                           attn_dtype=jnp.float32):
    """queries/keys/values: (B, D, d_model) float32.  Returns (out, attn|None)."""
    B, D, dm = queries.shape
    HEk = params["wq"].shape[1]
    HEv = params["wv"].shape[1]
    Ek = HEk // n_heads
    Ev = HEv // n_heads

    # --- pick a batch tile: fold several batch elements per grid step --------
    if batch_tile is None:
        per_b = 4 * (4 * D * dm + 2 * D * HEk + 2 * D * HEv
                     + (n_heads * D * D if output_attention else 0))
        budget = 8 << 20        # per-step block budget (x2 buffers stays well under VMEM)
        batch_tile = 1
        for tb in range(1, B + 1):
            if B % tb:
                continue
            if B >= 2 and B // tb < 2:      # keep >= 2 grid steps for megacore
                continue
            if tb * per_b <= budget:
                batch_tile = tb
    assert B % batch_tile == 0, "batch_tile must divide the batch size"
    TB = batch_tile
    grid = (B // TB,)

    kernel = partial(_varcor_attention_kernel, n_heads=n_heads,
                     output_attention=output_attention, attn_dtype=attn_dtype)

    def _rep(shape):
        nd = len(shape)
        return pl.BlockSpec(shape, lambda b, _nd=nd: (0,) * _nd)

    in_specs = [
        pl.BlockSpec((TB, D, dm), lambda b: (b, 0, 0)),    # queries
        pl.BlockSpec((TB, D, dm), lambda b: (b, 0, 0)),    # keys
        pl.BlockSpec((TB, D, dm), lambda b: (b, 0, 0)),    # values
        _rep(params["wq"].shape), _rep((1, HEk)),
        _rep(params["wk"].shape), _rep((1, HEk)),
        _rep(params["wv"].shape), _rep((1, HEv)),
        _rep(params["wo"].shape), _rep((1, dm)),
    ]

    out_specs = [pl.BlockSpec((TB, D, dm), lambda b: (b, 0, 0))]
    out_shapes = [jax.ShapeDtypeStruct((B, D, dm), jnp.float32)]
    if output_attention:
        out_specs.append(pl.BlockSpec((TB, n_heads, D, D), lambda b: (b, 0, 0, 0)))
        out_shapes.append(jax.ShapeDtypeStruct((B, n_heads, D, D), jnp.float32))

    # Advisory cost so XLA doesn't treat the custom call as free.
    flops = (2 * B * D * dm * (2 * HEk + HEv)          # Q/K/V projections
             + 2 * B * n_heads * D * D * (Ek + Ev)     # scores + AV
             + 2 * B * D * HEv * dm)                   # output projection
    transcendentals = B * n_heads * D * D              # exp
    bytes_accessed = 4 * (4 * B * D * dm               # q, k, v, out
                          + dm * (2 * HEk + HEv) + HEv * dm   # weights
                          + 2 * HEk + HEv + dm)        # biases
    if output_attention:
        bytes_accessed += 4 * B * n_heads * D * D

    outs = pl.pallas_call(
        kernel,
        out_shape=tuple(out_shapes),
        grid=grid,
        in_specs=in_specs,
        out_specs=tuple(out_specs),
        scratch_shapes=[pltpu.VMEM((TB, D, HEv), jnp.float32)],
        compiler_params=pltpu.CompilerParams(dimension_semantics=("parallel",)),
        cost_estimate=pl.CostEstimate(flops=flops,
                                      transcendentals=transcendentals,
                                      bytes_accessed=bytes_accessed),
    )(
        queries, keys, values,
        params["wq"], params["bq"].reshape(1, -1),
        params["wk"], params["bk"].reshape(1, -1),
        params["wv"], params["bv"].reshape(1, -1),
        params["wo"], params["bo"].reshape(1, -1),
    )

    if output_attention:
        out, attn = outs
    else:
        (out,) = outs
        attn = None
    return out, attn


def _reference_forward(queries, keys, values, params, n_heads):
    """Plain-JAX replica of the PyTorch forward (FullAttention, no mask)."""
    B, D, _ = queries.shape
    Q = queries @ params["wq"] + params["bq"]
    K = keys @ params["wk"] + params["bk"]
    V = values @ params["wv"] + params["bv"]
    HE = Q.shape[-1]
    E = HE // n_heads
    Qh = Q.reshape(B, D, n_heads, E)
    Kh = K.reshape(B, D, n_heads, E)
    Vh = V.reshape(B, D, n_heads, E)
    scores = jnp.einsum("bdhe,bshe->bhds", Qh, Kh) / math.sqrt(E)
    A = jax.nn.softmax(scores, axis=-1)
    O = jnp.einsum("bhds,bshe->bdhe", A, Vh).reshape(B, D, HE)
    out = O @ params["wo"] + params["bo"]
    return out, A


def _init_params(key, d_model, n_heads, d_keys=None, d_values=None):
    d_keys = d_keys or d_model // n_heads
    d_values = d_values or d_model // n_heads
    HE_k = d_keys * n_heads
    HE_v = d_values * n_heads
    ks = jax.random.split(key, 8)
    s = 0.1
    # Weights stored as (in_features, out_features); y = x @ W + b
    return {
        "wq": s * jax.random.normal(ks[0], (d_model, HE_k), jnp.float32),
        "bq": s * jax.random.normal(ks[1], (HE_k,), jnp.float32),
        "wk": s * jax.random.normal(ks[2], (d_model, HE_k), jnp.float32),
        "bk": s * jax.random.normal(ks[3], (HE_k,), jnp.float32),
        "wv": s * jax.random.normal(ks[4], (d_model, HE_v), jnp.float32),
        "bv": s * jax.random.normal(ks[5], (HE_v,), jnp.float32),
        "wo": s * jax.random.normal(ks[6], (HE_v, d_model), jnp.float32),
        "bo": s * jax.random.normal(ks[7], (d_model,), jnp.float32),
    }


if __name__ == "__main__":
    B, D, d_model, n_heads = 4, 8, 32, 4   # L == d_model per the module's forward

    key = jax.random.PRNGKey(0)
    kq, kk, kv, kp = jax.random.split(key, 4)
    queries = jax.random.normal(kq, (B, D, d_model), jnp.float32)
    keys = jax.random.normal(kk, (B, D, d_model), jnp.float32)
    values = jax.random.normal(kv, (B, D, d_model), jnp.float32)
    params = _init_params(kp, d_model, n_heads)

    out_ref, attn_ref = _reference_forward(queries, keys, values, params, n_heads)

    # Path 1: attention matrix materialized (matches output_attention=True).
    out, attn = varcor_attention_layer(queries, keys, values, params, n_heads,
                                       output_attention=True)
    out = jax.block_until_ready(out)
    attn = jax.block_until_ready(attn)
    assert out.shape == (B, D, d_model)
    assert attn.shape == (B, n_heads, D, D)
    assert jnp.allclose(out, out_ref, rtol=2e-3, atol=2e-3)
    assert jnp.allclose(attn, attn_ref, rtol=2e-3, atol=2e-3)

    # Path 2: no attention output (FullAttention with output_attention=False).
    out2, attn2 = varcor_attention_layer(queries, keys, values, params, n_heads,
                                         output_attention=False)
    out2 = jax.block_until_ready(out2)
    assert attn2 is None
    assert jnp.allclose(out2, out_ref, rtol=2e-3, atol=2e-3)

    print("KERNEL_OK")
</pallas_src>

<mosaic_0001>
module attributes {stable_mosaic.version = 11 : i64} {
  func.func @_varcor_attention_kernel(%arg0: i32, %arg1: memref<2x8x32xf32, #tpu.memory_space<vmem>>, %arg2: memref<2x8x32xf32, #tpu.memory_space<vmem>>, %arg3: memref<2x8x32xf32, #tpu.memory_space<vmem>>, %arg4: memref<32x32xf32, #tpu.memory_space<vmem>>, %arg5: memref<1x32xf32, #tpu.memory_space<vmem>>, %arg6: memref<32x32xf32, #tpu.memory_space<vmem>>, %arg7: memref<1x32xf32, #tpu.memory_space<vmem>>, %arg8: memref<32x32xf32, #tpu.memory_space<vmem>>, %arg9: memref<1x32xf32, #tpu.memory_space<vmem>>, %arg10: memref<32x32xf32, #tpu.memory_space<vmem>>, %arg11: memref<1x32xf32, #tpu.memory_space<vmem>>, %arg12: memref<2x8x32xf32, #tpu.memory_space<vmem>>, %arg13: memref<2x4x8x8xf32, #tpu.memory_space<vmem>>, %arg14: memref<2x8x32xf32, #tpu.memory_space<vmem>>) attributes {dimension_semantics = [#tpu.dimension_semantics<parallel>], iteration_bounds = array<i64: 2>, scalar_prefetch = 0 : i64, scratch_operands = 1 : i64, tpu.core_type = #tpu.core_type<tc>, window_params = [{transform_indices = @transform_0, window_bounds = array<i64: 2, 8, 32>}, {transform_indices = @transform_1, window_bounds = array<i64: 2, 8, 32>}, {transform_indices = @transform_2, window_bounds = array<i64: 2, 8, 32>}, {pipeline_mode = #tpu.pipeline_mode<synchronous>, transform_indices = @transform_3, window_bounds = array<i64: 32, 32>}, {pipeline_mode = #tpu.pipeline_mode<synchronous>, transform_indices = @transform_4, window_bounds = array<i64: 1, 32>}, {pipeline_mode = #tpu.pipeline_mode<synchronous>, transform_indices = @transform_5, window_bounds = array<i64: 32, 32>}, {pipeline_mode = #tpu.pipeline_mode<synchronous>, transform_indices = @transform_6, window_bounds = array<i64: 1, 32>}, {pipeline_mode = #tpu.pipeline_mode<synchronous>, transform_indices = @transform_7, window_bounds = array<i64: 32, 32>}, {pipeline_mode = #tpu.pipeline_mode<synchronous>, transform_indices = @transform_8, window_bounds = array<i64: 1, 32>}, {pipeline_mode = #tpu.pipeline_mode<synchronous>, transform_indices = @transform_9, window_bounds = array<i64: 32, 32>}, {pipeline_mode = #tpu.pipeline_mode<synchronous>, transform_indices = @transform_10, window_bounds = array<i64: 1, 32>}, {transform_indices = @transform_11, window_bounds = array<i64: 2, 8, 32>}, {transform_indices = @transform_12, window_bounds = array<i64: 2, 4, 8, 8>}]} {
    %c0 = arith.constant 0 : index
    %c0_0 = arith.constant 0 : index
    %c0_1 = arith.constant 0 : index
    %0 = vector.load %arg1[%c0, %c0_0, %c0_1] : memref<2x8x32xf32, #tpu.memory_space<vmem>>, vector<2x8x32xf32>
    %1 = vector.shape_cast %0 : vector<2x8x32xf32> to vector<16x32xf32>
    %c0_2 = arith.constant 0 : index
    %c0_3 = arith.constant 0 : index
    %c0_4 = arith.constant 0 : index
    %2 = vector.load %arg2[%c0_2, %c0_3, %c0_4] : memref<2x8x32xf32, #tpu.memory_space<vmem>>, vector<2x8x32xf32>
    %3 = vector.shape_cast %2 : vector<2x8x32xf32> to vector<16x32xf32>
    %c0_5 = arith.constant 0 : index
    %c0_6 = arith.constant 0 : index
    %c0_7 = arith.constant 0 : index
    %4 = vector.load %arg3[%c0_5, %c0_6, %c0_7] : memref<2x8x32xf32, #tpu.memory_space<vmem>>, vector<2x8x32xf32>
    %5 = vector.shape_cast %4 : vector<2x8x32xf32> to vector<16x32xf32>
    %c0_8 = arith.constant 0 : index
    %c0_9 = arith.constant 0 : index
    %6 = vector.load %arg4[%c0_8, %c0_9] : memref<32x32xf32, #tpu.memory_space<vmem>>, vector<32x32xf32>
    %cst = arith.constant dense<0.000000e+00> : vector<16x32xf32>
    %7 = tpu.matmul %1, %6, %cst {dimension_numbers = #tpu.dot_dimension_numbers<[1], [0], [0], [1], [0, 0, 1, 1], [], []>} : vector<16x32xf32>, vector<32x32xf32>, vector<16x32xf32> -> vector<16x32xf32>
    %c0_10 = arith.constant 0 : index
    %c0_11 = arith.constant 0 : index
    %8 = vector.load %arg5[%c0_10, %c0_11] : memref<1x32xf32, #tpu.memory_space<vmem>>, vector<1x32xf32>
    %9 = vector.broadcast %8 : vector<1x32xf32> to vector<16x32xf32>
    %10 = arith.addf %7, %9 : vector<16x32xf32>
    %cst_12 = arith.constant 0.353553385 : f32
    %11 = vector.broadcast %cst_12 : f32 to vector<16x32xf32>
    %12 = arith.mulf %10, %11 : vector<16x32xf32>
    %c0_13 = arith.constant 0 : index
    %c0_14 = arith.constant 0 : index
    %13 = vector.load %arg6[%c0_13, %c0_14] : memref<32x32xf32, #tpu.memory_space<vmem>>, vector<32x32xf32>
    %cst_15 = arith.constant dense<0.000000e+00> : vector<16x32xf32>
    %14 = tpu.matmul %3, %13, %cst_15 {dimension_numbers = #tpu.dot_dimension_numbers<[1], [0], [0], [1], [0, 0, 1, 1], [], []>} : vector<16x32xf32>, vector<32x32xf32>, vector<16x32xf32> -> vector<16x32xf32>
    %c0_16 = arith.constant 0 : index
    %c0_17 = arith.constant 0 : index
    %15 = vector.load %arg7[%c0_16, %c0_17] : memref<1x32xf32, #tpu.memory_space<vmem>>, vector<1x32xf32>
    %16 = vector.broadcast %15 : vector<1x32xf32> to vector<16x32xf32>
    %17 = arith.addf %14, %16 : vector<16x32xf32>
    %c0_18 = arith.constant 0 : index
    %c0_19 = arith.constant 0 : index
    %18 = vector.load %arg8[%c0_18, %c0_19] : memref<32x32xf32, #tpu.memory_space<vmem>>, vector<32x32xf32>
    %cst_20 = arith.constant dense<0.000000e+00> : vector<16x32xf32>
    %19 = tpu.matmul %5, %18, %cst_20 {dimension_numbers = #tpu.dot_dimension_numbers<[1], [0], [0], [1], [0, 0, 1, 1], [], []>} : vector<16x32xf32>, vector<32x32xf32>, vector<16x32xf32> -> vector<16x32xf32>
    %c0_21 = arith.constant 0 : index
    %c0_22 = arith.constant 0 : index
    %20 = vector.load %arg9[%c0_21, %c0_22] : memref<1x32xf32, #tpu.memory_space<vmem>>, vector<1x32xf32>
    %21 = vector.broadcast %20 : vector<1x32xf32> to vector<16x32xf32>
    %22 = arith.addf %19, %21 : vector<16x32xf32>
    %23 = vector.shape_cast %12 : vector<16x32xf32> to vector<2x8x32xf32>
    %24 = vector.shape_cast %17 : vector<16x32xf32> to vector<2x8x32xf32>
    %25 = vector.shape_cast %22 : vector<16x32xf32> to vector<2x8x32xf32>
    %26 = vector.extract_strided_slice %23 {offsets = [0, 0, 0], sizes = [2, 8, 8], strides = [1, 1, 1]} : vector<2x8x32xf32> to vector<2x8x8xf32>
    %27 = vector.extract_strided_slice %24 {offsets = [0, 0, 0], sizes = [2, 8, 8], strides = [1, 1, 1]} : vector<2x8x32xf32> to vector<2x8x8xf32>
    %28 = vector.extract_strided_slice %25 {offsets = [0, 0, 0], sizes = [2, 8, 8], strides = [1, 1, 1]} : vector<2x8x32xf32> to vector<2x8x8xf32>
    "tpu.trace_start"() <{level = 10 : i32, message = "bde,bse->bds"}> : () -> ()
    %cst_23 = arith.constant dense<0.000000e+00> : vector<2x8x8xf32>
    %29 = tpu.matmul %26, %27, %cst_23 {dimension_numbers = #tpu.dot_dimension_numbers<[2], [2], [1], [1], [0, 0, 0, 1, 1, 1], [0], [0]>} : vector<2x8x8xf32>, vector<2x8x8xf32>, vector<2x8x8xf32> -> vector<2x8x8xf32>
    "tpu.trace_stop"() : () -> ()
    %cst_24 = arith.constant dense<0xFF800000> : vector<2x8xf32>
    %30 = vector.multi_reduction <maximumf>, %29, %cst_24 [2] : vector<2x8x8xf32> to vector<2x8xf32>
    %31 = vector.shape_cast %30 : vector<2x8xf32> to vector<2x8x1xf32>
    %32 = vector.broadcast %31 : vector<2x8x1xf32> to vector<2x8x8xf32>
    %33 = arith.subf %29, %32 : vector<2x8x8xf32>
    %34 = math.exp %33 : vector<2x8x8xf32>
    %cst_25 = arith.constant dense<0.000000e+00> : vector<2x8xf32>
    %35 = vector.multi_reduction <add>, %34, %cst_25 [2] : vector<2x8x8xf32> to vector<2x8xf32>
    %36 = vector.shape_cast %35 : vector<2x8xf32> to vector<2x8x1xf32>
    %37 = tpu.reciprocal %36 {approx = true} : vector<2x8x1xf32> -> vector<2x8x1xf32>
    %38 = vector.broadcast %37 : vector<2x8x1xf32> to vector<2x8x8xf32>
    %39 = arith.mulf %34, %38 : vector<2x8x8xf32>
    %c0_26 = arith.constant 0 : index
    %c0_27 = arith.constant 0 : index
    %c0_28 = arith.constant 0 : index
    %c0_29 = arith.constant 0 : index
    %40 = vector.load %arg13[%c0_26, %c0_27, %c0_28, %c0_29] : memref<2x4x8x8xf32, #tpu.memory_space<vmem>>, vector<2x1x8x8xf32>
    %41 = vector.shape_cast %40 : vector<2x1x8x8xf32> to vector<2x8x8xf32>
    %42 = vector.shape_cast %39 : vector<2x8x8xf32> to vector<2x1x8x8xf32>
    tpu.vector_store %arg13[%c0_26, %c0_27, %c0_28, %c0_29], %42 {strides = array<i32>} : memref<2x4x8x8xf32, #tpu.memory_space<vmem>>, vector<2x1x8x8xf32>,
    "tpu.trace_start"() <{level = 10 : i32, message = "bds,bse->bde"}> : () -> ()
    %cst_30 = arith.constant dense<0.000000e+00> : vector<2x8x8xf32>
    %43 = tpu.matmul %39, %28, %cst_30 {dimension_numbers = #tpu.dot_dimension_numbers<[2], [1], [1], [2], [0, 0, 0, 1, 1, 2], [0], [0]>} : vector<2x8x8xf32>, vector<2x8x8xf32>, vector<2x8x8xf32> -> vector<2x8x8xf32>
    "tpu.trace_stop"() : () -> ()
    %c0_31 = arith.constant 0 : index
    %c0_32 = arith.constant 0 : index
    %c0_33 = arith.constant 0 : index
    %44 = vector.load %arg14[%c0_31, %c0_32, %c0_33] : memref<2x8x32xf32, #tpu.memory_space<vmem>>, vector<2x8x8xf32>
    tpu.vector_store %arg14[%c0_31, %c0_32, %c0_33], %43 {strides = array<i32>} : memref<2x8x32xf32, #tpu.memory_space<vmem>>, vector<2x8x8xf32>,
    %45 = vector.extract_strided_slice %23 {offsets = [0, 0, 8], sizes = [2, 8, 8], strides = [1, 1, 1]} : vector<2x8x32xf32> to vector<2x8x8xf32>
    %46 = vector.extract_strided_slice %24 {offsets = [0, 0, 8], sizes = [2, 8, 8], strides = [1, 1, 1]} : vector<2x8x32xf32> to vector<2x8x8xf32>
    %47 = vector.extract_strided_slice %25 {offsets = [0, 0, 8], sizes = [2, 8, 8], strides = [1, 1, 1]} : vector<2x8x32xf32> to vector<2x8x8xf32>
    "tpu.trace_start"() <{level = 10 : i32, message = "bde,bse->bds"}> : () -> ()
    %cst_34 = arith.constant dense<0.000000e+00> : vector<2x8x8xf32>
    %48 = tpu.matmul %45, %46, %cst_34 {dimension_numbers = #tpu.dot_dimension_numbers<[2], [2], [1], [1], [0, 0, 0, 1, 1, 1], [0], [0]>} : vector<2x8x8xf32>, vector<2x8x8xf32>, vector<2x8x8xf32> -> vector<2x8x8xf32>
    "tpu.trace_stop"() : () -> ()
    %cst_35 = arith.constant dense<0xFF800000> : vector<2x8xf32>
    %49 = vector.multi_reduction <maximumf>, %48, %cst_35 [2] : vector<2x8x8xf32> to vector<2x8xf32>
    %50 = vector.shape_cast %49 : vector<2x8xf32> to vector<2x8x1xf32>
    %51 = vector.broadcast %50 : vector<2x8x1xf32> to vector<2x8x8xf32>
    %52 = arith.subf %48, %51 : vector<2x8x8xf32>
    %53 = math.exp %52 : vector<2x8x8xf32>
    %cst_36 = arith.constant dense<0.000000e+00> : vector<2x8xf32>
    %54 = vector.multi_reduction <add>, %53, %cst_36 [2] : vector<2x8x8xf32> to vector<2x8xf32>
    %55 = vector.shape_cast %54 : vector<2x8xf32> to vector<2x8x1xf32>
    %56 = tpu.reciprocal %55 {approx = true} : vector<2x8x1xf32> -> vector<2x8x1xf32>
    %57 = vector.broadcast %56 : vector<2x8x1xf32> to vector<2x8x8xf32>
    %58 = arith.mulf %53, %57 : vector<2x8x8xf32>
    %c0_37 = arith.constant 0 : index
    %c1 = arith.constant 1 : index
    %c0_38 = arith.constant 0 : index
    %c0_39 = arith.constant 0 : index
    %59 = vector.load %arg13[%c0_37, %c1, %c0_38, %c0_39] : memref<2x4x8x8xf32, #tpu.memory_space<vmem>>, vector<2x1x8x8xf32>
    %60 = vector.shape_cast %59 : vector<2x1x8x8xf32> to vector<2x8x8xf32>
    %61 = vector.shape_cast %58 : vector<2x8x8xf32> to vector<2x1x8x8xf32>
    tpu.vector_store %arg13[%c0_37, %c1, %c0_38, %c0_39], %61 {strides = array<i32>} : memref<2x4x8x8xf32, #tpu.memory_space<vmem>>, vector<2x1x8x8xf32>,
    "tpu.trace_start"() <{level = 10 : i32, message = "bds,bse->bde"}> : () -> ()
    %cst_40 = arith.constant dense<0.000000e+00> : vector<2x8x8xf32>
    %62 = tpu.matmul %58, %47, %cst_40 {dimension_numbers = #tpu.dot_dimension_numbers<[2], [1], [1], [2], [0, 0, 0, 1, 1, 2], [0], [0]>} : vector<2x8x8xf32>, vector<2x8x8xf32>, vector<2x8x8xf32> -> vector<2x8x8xf32>
    "tpu.trace_stop"() : () -> ()
    %c0_41 = arith.constant 0 : index
    %c0_42 = arith.constant 0 : index
    %c8 = arith.constant 8 : index
    %63 = vector.load %arg14[%c0_41, %c0_42, %c8] : memref<2x8x32xf32, #tpu.memory_space<vmem>>, vector<2x8x8xf32>
    tpu.vector_store %arg14[%c0_41, %c0_42, %c8], %62 {strides = array<i32>} : memref<2x8x32xf32, #tpu.memory_space<vmem>>, vector<2x8x8xf32>,
    %64 = vector.extract_strided_slice %23 {offsets = [0, 0, 16], sizes = [2, 8, 8], strides = [1, 1, 1]} : vector<2x8x32xf32> to vector<2x8x8xf32>
    %65 = vector.extract_strided_slice %24 {offsets = [0, 0, 16], sizes = [2, 8, 8], strides = [1, 1, 1]} : vector<2x8x32xf32> to vector<2x8x8xf32>
    %66 = vector.extract_strided_slice %25 {offsets = [0, 0, 16], sizes = [2, 8, 8], strides = [1, 1, 1]} : vector<2x8x32xf32> to vector<2x8x8xf32>
    "tpu.trace_start"() <{level = 10 : i32, message = "bde,bse->bds"}> : () -> ()
    %cst_43 = arith.constant dense<0.000000e+00> : vector<2x8x8xf32>
    %67 = tpu.matmul %64, %65, %cst_43 {dimension_numbers = #tpu.dot_dimension_numbers<[2], [2], [1], [1], [0, 0, 0, 1, 1, 1], [0], [0]>} : vector<2x8x8xf32>, vector<2x8x8xf32>, vector<2x8x8xf32> -> vector<2x8x8xf32>
    "tpu.trace_stop"() : () -> ()
    %cst_44 = arith.constant dense<0xFF800000> : vector<2x8xf32>
    %68 = vector.multi_reduction <maximumf>, %67, %cst_44 [2] : vector<2x8x8xf32> to vector<2x8xf32>
    %69 = vector.shape_cast %68 : vector<2x8xf32> to vector<2x8x1xf32>
    %70 = vector.broadcast %69 : vector<2x8x1xf32> to vector<2x8x8xf32>
    %71 = arith.subf %67, %70 : vector<2x8x8xf32>
    %72 = math.exp %71 : vector<2x8x8xf32>
    %cst_45 = arith.constant dense<0.000000e+00> : vector<2x8xf32>
    %73 = vector.multi_reduction <add>, %72, %cst_45 [2] : vector<2x8x8xf32> to vector<2x8xf32>
    %74 = vector.shape_cast %73 : vector<2x8xf32> to vector<2x8x1xf32>
    %75 = tpu.reciprocal %74 {approx = true} : vector<2x8x1xf32> -> vector<2x8x1xf32>
    %76 = vector.broadcast %75 : vector<2x8x1xf32> to vector<2x8x8xf32>
    %77 = arith.mulf %72, %76 : vector<2x8x8xf32>
    %c0_46 = arith.constant 0 : index
    %c2 = arith.constant 2 : index
    %c0_47 = arith.constant 0 : index
    %c0_48 = arith.constant 0 : index
    %78 = vector.load %arg13[%c0_46, %c2, %c0_47, %c0_48] : memref<2x4x8x8xf32, #tpu.memory_space<vmem>>, vector<2x1x8x8xf32>
    %79 = vector.shape_cast %78 : vector<2x1x8x8xf32> to vector<2x8x8xf32>
    %80 = vector.shape_cast %77 : vector<2x8x8xf32> to vector<2x1x8x8xf32>
    tpu.vector_store %arg13[%c0_46, %c2, %c0_47, %c0_48], %80 {strides = array<i32>} : memref<2x4x8x8xf32, #tpu.memory_space<vmem>>, vector<2x1x8x8xf32>,
    "tpu.trace_start"() <{level = 10 : i32, message = "bds,bse->bde"}> : () -> ()
    %cst_49 = arith.constant dense<0.000000e+00> : vector<2x8x8xf32>
    %81 = tpu.matmul %77, %66, %cst_49 {dimension_numbers = #tpu.dot_dimension_numbers<[2], [1], [1], [2], [0, 0, 0, 1, 1, 2], [0], [0]>} : vector<2x8x8xf32>, vector<2x8x8xf32>, vector<2x8x8xf32> -> vector<2x8x8xf32>
    "tpu.trace_stop"() : () -> ()
    %c0_50 = arith.constant 0 : index
    %c0_51 = arith.constant 0 : index
    %c16 = arith.constant 16 : index
    %82 = vector.load %arg14[%c0_50, %c0_51, %c16] : memref<2x8x32xf32, #tpu.memory_space<vmem>>, vector<2x8x8xf32>
    tpu.vector_store %arg14[%c0_50, %c0_51, %c16], %81 {strides = array<i32>} : memref<2x8x32xf32, #tpu.memory_space<vmem>>, vector<2x8x8xf32>,
    %83 = vector.extract_strided_slice %23 {offsets = [0, 0, 24], sizes = [2, 8, 8], strides = [1, 1, 1]} : vector<2x8x32xf32> to vector<2x8x8xf32>
    %84 = vector.extract_strided_slice %24 {offsets = [0, 0, 24], sizes = [2, 8, 8], strides = [1, 1, 1]} : vector<2x8x32xf32> to vector<2x8x8xf32>
    %85 = vector.extract_strided_slice %25 {offsets = [0, 0, 24], sizes = [2, 8, 8], strides = [1, 1, 1]} : vector<2x8x32xf32> to vector<2x8x8xf32>
    "tpu.trace_start"() <{level = 10 : i32, message = "bde,bse->bds"}> : () -> ()
    %cst_52 = arith.constant dense<0.000000e+00> : vector<2x8x8xf32>
    %86 = tpu.matmul %83, %84, %cst_52 {dimension_numbers = #tpu.dot_dimension_numbers<[2], [2], [1], [1], [0, 0, 0, 1, 1, 1], [0], [0]>} : vector<2x8x8xf32>, vector<2x8x8xf32>, vector<2x8x8xf32> -> vector<2x8x8xf32>
    "tpu.trace_stop"() : () -> ()
    %cst_53 = arith.constant dense<0xFF800000> : vector<2x8xf32>
    %87 = vector.multi_reduction <maximumf>, %86, %cst_53 [2] : vector<2x8x8xf32> to vector<2x8xf32>
    %88 = vector.shape_cast %87 : vector<2x8xf32> to vector<2x8x1xf32>
    %89 = vector.broadcast %88 : vector<2x8x1xf32> to vector<2x8x8xf32>
    %90 = arith.subf %86, %89 : vector<2x8x8xf32>
    %91 = math.exp %90 : vector<2x8x8xf32>
    %cst_54 = arith.constant dense<0.000000e+00> : vector<2x8xf32>
    %92 = vector.multi_reduction <add>, %91, %cst_54 [2] : vector<2x8x8xf32> to vector<2x8xf32>
    %93 = vector.shape_cast %92 : vector<2x8xf32> to vector<2x8x1xf32>
    %94 = tpu.reciprocal %93 {approx = true} : vector<2x8x1xf32> -> vector<2x8x1xf32>
    %95 = vector.broadcast %94 : vector<2x8x1xf32> to vector<2x8x8xf32>
    %96 = arith.mulf %91, %95 : vector<2x8x8xf32>
    %c0_55 = arith.constant 0 : index
    %c3 = arith.constant 3 : index
    %c0_56 = arith.constant 0 : index
    %c0_57 = arith.constant 0 : index
    %97 = vector.load %arg13[%c0_55, %c3, %c0_56, %c0_57] : memref<2x4x8x8xf32, #tpu.memory_space<vmem>>, vector<2x1x8x8xf32>
    %98 = vector.shape_cast %97 : vector<2x1x8x8xf32> to vector<2x8x8xf32>
    %99 = vector.shape_cast %96 : vector<2x8x8xf32> to vector<2x1x8x8xf32>
    tpu.vector_store %arg13[%c0_55, %c3, %c0_56, %c0_57], %99 {strides = array<i32>} : memref<2x4x8x8xf32, #tpu.memory_space<vmem>>, vector<2x1x8x8xf32>,
    "tpu.trace_start"() <{level = 10 : i32, message = "bds,bse->bde"}> : () -> ()
    %cst_58 = arith.constant dense<0.000000e+00> : vector<2x8x8xf32>
    %100 = tpu.matmul %96, %85, %cst_58 {dimension_numbers = #tpu.dot_dimension_numbers<[2], [1], [1], [2], [0, 0, 0, 1, 1, 2], [0], [0]>} : vector<2x8x8xf32>, vector<2x8x8xf32>, vector<2x8x8xf32> -> vector<2x8x8xf32>
    "tpu.trace_stop"() : () -> ()
    %c0_59 = arith.constant 0 : index
    %c0_60 = arith.constant 0 : index
    %c24 = arith.constant 24 : index
    %101 = vector.load %arg14[%c0_59, %c0_60, %c24] : memref<2x8x32xf32, #tpu.memory_space<vmem>>, vector<2x8x8xf32>
    tpu.vector_store %arg14[%c0_59, %c0_60, %c24], %100 {strides = array<i32>} : memref<2x8x32xf32, #tpu.memory_space<vmem>>, vector<2x8x8xf32>,
    %c0_61 = arith.constant 0 : index
    %c0_62 = arith.constant 0 : index
    %c0_63 = arith.constant 0 : index
    %102 = vector.load %arg14[%c0_61, %c0_62, %c0_63] : memref<2x8x32xf32, #tpu.memory_space<vmem>>, vector<2x8x32xf32>
    %103 = vector.shape_cast %102 : vector<2x8x32xf32> to vector<16x32xf32>
    %c0_64 = arith.constant 0 : index
    %c0_65 = arith.constant 0 : index
    %104 = vector.load %arg10[%c0_64, %c0_65] : memref<32x32xf32, #tpu.memory_space<vmem>>, vector<32x32xf32>
    %cst_66 = arith.constant dense<0.000000e+00> : vector<16x32xf32>
    %105 = tpu.matmul %103, %104, %cst_66 {dimension_numbers = #tpu.dot_dimension_numbers<[1], [0], [0], [1], [0, 0, 1, 1], [], []>} : vector<16x32xf32>, vector<32x32xf32>, vector<16x32xf32> -> vector<16x32xf32>
    %c0_67 = arith.constant 0 : index
    %c0_68 = arith.constant 0 : index
    %106 = vector.load %arg11[%c0_67, %c0_68] : memref<1x32xf32, #tpu.memory_space<vmem>>, vector<1x32xf32>
    %107 = vector.broadcast %106 : vector<1x32xf32> to vector<16x32xf32>
    %108 = arith.addf %105, %107 : vector<16x32xf32>
    %109 = vector.shape_cast %108 : vector<16x32xf32> to vector<2x8x32xf32>
    %c0_69 = arith.constant 0 : index
    %c0_70 = arith.constant 0 : index
    %c0_71 = arith.constant 0 : index
    %110 = vector.load %arg12[%c0_69, %c0_70, %c0_71] : memref<2x8x32xf32, #tpu.memory_space<vmem>>, vector<2x8x32xf32>
    tpu.vector_store %arg12[%c0_69, %c0_70, %c0_71], %109 {strides = array<i32>} : memref<2x8x32xf32, #tpu.memory_space<vmem>>, vector<2x8x32xf32>,
    return
  }
  func.func @transform_0(%arg0: i32) -> (i32, i32, i32) {
    %c0_i32 = arith.constant 0 : i32
    %c0_i32_0 = arith.constant 0 : i32
    %c0_i32_1 = arith.constant 0 : i32
    return %arg0, %c0_i32, %c0_i32_0 : i32, i32, i32
  }
  func.func @transform_1(%arg0: i32) -> (i32, i32, i32) {
    %c0_i32 = arith.constant 0 : i32
    %c0_i32_0 = arith.constant 0 : i32
    %c0_i32_1 = arith.constant 0 : i32
    return %arg0, %c0_i32, %c0_i32_0 : i32, i32, i32
  }
  func.func @transform_2(%arg0: i32) -> (i32, i32, i32) {
    %c0_i32 = arith.constant 0 : i32
    %c0_i32_0 = arith.constant 0 : i32
    %c0_i32_1 = arith.constant 0 : i32
    return %arg0, %c0_i32, %c0_i32_0 : i32, i32, i32
  }
  func.func @transform_3(%arg0: i32) -> (i32, i32) {
    %c0_i32 = arith.constant 0 : i32
    %c0_i32_0 = arith.constant 0 : i32
    %c0_i32_1 = arith.constant 0 : i32
    return %c0_i32, %c0_i32_0 : i32, i32
  }
  func.func @transform_4(%arg0: i32) -> (i32, i32) {
    %c0_i32 = arith.constant 0 : i32
    %c0_i32_0 = arith.constant 0 : i32
    %c0_i32_1 = arith.constant 0 : i32
    return %c0_i32, %c0_i32_0 : i32, i32
  }
  func.func @transform_5(%arg0: i32) -> (i32, i32) {
    %c0_i32 = arith.constant 0 : i32
    %c0_i32_0 = arith.constant 0 : i32
    %c0_i32_1 = arith.constant 0 : i32
    return %c0_i32, %c0_i32_0 : i32, i32
  }
  func.func @transform_6(%arg0: i32) -> (i32, i32) {
    %c0_i32 = arith.constant 0 : i32
    %c0_i32_0 = arith.constant 0 : i32
    %c0_i32_1 = arith.constant 0 : i32
    return %c0_i32, %c0_i32_0 : i32, i32
  }
  func.func @transform_7(%arg0: i32) -> (i32, i32) {
    %c0_i32 = arith.constant 0 : i32
    %c0_i32_0 = arith.constant 0 : i32
    %c0_i32_1 = arith.constant 0 : i32
    return %c0_i32, %c0_i32_0 : i32, i32
  }
  func.func @transform_8(%arg0: i32) -> (i32, i32) {
    %c0_i32 = arith.constant 0 : i32
    %c0_i32_0 = arith.constant 0 : i32
    %c0_i32_1 = arith.constant 0 : i32
    return %c0_i32, %c0_i32_0 : i32, i32
  }
  func.func @transform_9(%arg0: i32) -> (i32, i32) {
    %c0_i32 = arith.constant 0 : i32
    %c0_i32_0 = arith.constant 0 : i32
    %c0_i32_1 = arith.constant 0 : i32
    return %c0_i32, %c0_i32_0 : i32, i32
  }
  func.func @transform_10(%arg0: i32) -> (i32, i32) {
    %c0_i32 = arith.constant 0 : i32
    %c0_i32_0 = arith.constant 0 : i32
    %c0_i32_1 = arith.constant 0 : i32
    return %c0_i32, %c0_i32_0 : i32, i32
  }
  func.func @transform_11(%arg0: i32) -> (i32, i32, i32) {
    %c0_i32 = arith.constant 0 : i32
    %c0_i32_0 = arith.constant 0 : i32
    %c0_i32_1 = arith.constant 0 : i32
    return %arg0, %c0_i32, %c0_i32_0 : i32, i32, i32
  }
  func.func @transform_12(%arg0: i32) -> (i32, i32, i32, i32) {
    %c0_i32 = arith.constant 0 : i32
    %c0_i32_0 = arith.constant 0 : i32
    %c0_i32_1 = arith.constant 0 : i32
    %c0_i32_2 = arith.constant 0 : i32
    return %arg0, %c0_i32, %c0_i32_0, %c0_i32_1 : i32, i32, i32, i32
  }
}

</mosaic_0001>

<llo_original>
// kernel: tpu_custom_call.1
$region0: #{tpu_custom_call.1}
  #allocation0 [shape = 'u32[]', space=smem, size = 0x4, offset = 0x4, fixed_abs, tag = 'smem constant byte address 0x4 - core index']
  #allocation1 [shape = 'u32[144,128]{1,0:T(1,128)}', space=vmem, size = 0x12000, scoped, tag = 'internal scratch']
  #allocation2 [shape = 'f32[2,8,32]{2,1,0:T(8,128)}', space=vmem, size = 0x2000, scoped, tag = 'scratch operand']
  %s0 = inlined_call_operand.hbm [shape: f32[4,8,32], index: 0, kind: input, shape index: {}]
  %s1 = inlined_call_operand.hbm [shape: f32[4,8,32], index: 1, kind: input, shape index: {}]
  %s2 = inlined_call_operand.hbm [shape: f32[4,8,32], index: 2, kind: input, shape index: {}]
  %s3 = inlined_call_operand.hbm [shape: f32[32,32], index: 3, kind: input, shape index: {}]
  %s4 = inlined_call_operand.vmem [shape: f32[1,32], index: 4, kind: input, shape index: {}]
  %s5 = inlined_call_operand.hbm [shape: f32[32,32], index: 5, kind: input, shape index: {}]
  %s6 = inlined_call_operand.vmem [shape: f32[1,32], index: 6, kind: input, shape index: {}]
  %s7 = inlined_call_operand.hbm [shape: f32[32,32], index: 7, kind: input, shape index: {}]
  %s8 = inlined_call_operand.hbm [shape: f32[1,32], index: 8, kind: input, shape index: {}]
  %s9 = inlined_call_operand.vmem [shape: f32[32,32], index: 9, kind: input, shape index: {}]
  %s10 = inlined_call_operand.vmem [shape: f32[1,32], index: 10, kind: input, shape index: {}]
  %s11 = inlined_call_operand.hbm [shape: f32[4,8,32], index: 11, kind: output, shape index: {0}]
  %s12 = inlined_call_operand.hbm [shape: f32[4,4,8,8], index: 12, kind: output, shape index: {1}]
  %13 = xla_tuple %s11, %s12
  %s14 = sld [smem:[#allocation0]]
  $region113: #{tpu_custom_call.1} parent=0
    _
  %s16 = ssub.s32 1, %s14
  %s17 = scalar_select 0, %s16, %s14
  $region1: #{tpu_custom_call.1} parent=0
    #allocation3 [shape = 'u8[16384]{0}', space=vmem, size = 0x4000, scoped, tag = 'input window, operand 0']
    #allocation4 [shape = 's32[2]{0}', space=sflag, size = 0x8, scoped, tag = 'scoped memory for tpu_custom_call.1']
    #allocation5 [shape = 's32[2]{0}', space=sflag, size = 0x8, scoped, tag = 'scoped memory for tpu_custom_call.1']
    #allocation6 [shape = 'u8[16384]{0}', space=vmem, size = 0x4000, scoped, tag = 'input window, operand 1']
    #allocation7 [shape = 's32[2]{0}', space=sflag, size = 0x8, scoped, tag = 'scoped memory for tpu_custom_call.1']
    #allocation8 [shape = 'u8[16384]{0}', space=vmem, size = 0x4000, scoped, tag = 'input window, operand 2']
    #allocation9 [shape = 'u8[16384]{0}', space=vmem, size = 0x4000, scoped, tag = 'input window, operand 3, single buffered']
    #allocation10 [shape = 's32[1]{0}', space=sflag, size = 0x4, scoped, tag = 'scoped memory for tpu_custom_call.1']
    #allocation11 [shape = 'u8[16384]{0}', space=vmem, size = 0x4000, scoped, tag = 'input window, operand 5, single buffered']
    #allocation12 [shape = 'u8[16384]{0}', space=vmem, size = 0x4000, scoped, tag = 'input window, operand 7, single buffered']
    #allocation13 [shape = 's32[1]{0}', space=sflag, size = 0x4, scoped, tag = 'scoped memory for tpu_custom_call.1']
    #allocation14 [shape = 'u8[512]{0}', space=vmem, size = 0x400, scoped, tag = 'input window, operand 8, single buffered']
    #allocation15 [shape = 'u8[16384]{0}', space=vmem, size = 0x4000, scoped, tag = 'output window, operand 0']
    #allocation16 [shape = 'u8[65536]{0}', space=vmem, size = 0x10000, scoped, tag = 'output window, operand 1']
    #allocation17 [shape = 's32[2]{0}', space=sflag, size = 0x8, scoped, tag = 'scoped memory for tpu_custom_call.1']
    %18 = vsyncpa [#allocation4], 0
    %s19 = scalar_lea.sflag [#allocation4], 1
    %20 = vsyncpa %s19, 0
    %21 = vsyncpa [#allocation7], 0
    %s22 = scalar_lea.sflag [#allocation7], 1
    %23 = vsyncpa %s22, 0
    %24 = vsyncpa [#allocation10], 0
    %25 = vsyncpa [#allocation13], 0
    %26 = vsyncpa [#allocation5], 0
    %s27 = scalar_lea.sflag [#allocation5], 1
    %28 = vsyncpa %s27, 0
    %29 = vsyncpa [#allocation17], 0
    %s30 = scalar_lea.sflag [#allocation17], 1
    %31 = vsyncpa %s30, 0
    loop: start=0, step=1, limit=4
    $region2: #{tpu_custom_call.1} parent=1 // loop_pre_header
      _
    $region3: #{tpu_custom_call.1} parent=1 // loop_header
      %s33 = sphi 0, %s37
      %p34 = scmp.ge.s32.totalorder %s33, 4
      %s43 = sphi 0, %s45
      %s46 = sphi 0, %s43
      %s47 = sphi 0, %s46
      %s63 = sphi 0, %s47
      %s69 = sphi 0, %s71
      %s72 = sphi 0, %s69
      %s73 = sphi 0, %s72
      %s89 = sphi 0, %s73
      %s95 = sphi 0, %s97
      %s98 = sphi 0, %s95
      %s99 = sphi 0, %s98
      %s115 = sphi 0, %s99
      %s119 = sphi 0, %s119
      %s121 = sphi 0, %s119
      %s122 = sphi 0, %s121
      %s136 = sphi 0, %s122
      %s140 = sphi 0, %s140
      %s142 = sphi 0, %s140
      %s143 = sphi 0, %s142
      %s157 = sphi 0, %s143
      %s161 = sphi 0, %s161
      %s163 = sphi 0, %s161
      %s164 = sphi 0, %s163
      %s178 = sphi 0, %s164
      %s182 = sphi 0, %s182
      %s184 = sphi 0, %s182
      %s185 = sphi 0, %s184
      %s199 = sphi 0, %s185
      %s203 = sphi 0, %s203
      %s205 = sphi 0, %s203
      %s206 = sphi 0, %s205
      %s220 = sphi 0, %s206
      %s224 = sphi 0, %s224
      %s226 = sphi 0, %s224
      %s227 = sphi 0, %s226
      %s241 = sphi 0, %s227
      %s245 = sphi 0, %s245
      %s247 = sphi 0, %s245
      %s248 = sphi 0, %s247
      %s262 = sphi 0, %s248
      %s266 = sphi 0, %s266
      %s268 = sphi 0, %s266
      %s269 = sphi 0, %s268
      %s283 = sphi 0, %s269
      %s289 = sphi 0, %s291
      %s292 = sphi 0, %s289
      %s293 = sphi 0, %s292
      %s309 = sphi 0, %s293
      %s315 = sphi 0, %s317
      %s318 = sphi 0, %s315
      %s319 = sphi 0, %s318
      %s335 = sphi 0, %s319
    $region4: #{tpu_custom_call.1} parent=1 // loop_header_branch
      %36 = sbr.rel (%p34) target = $region8
    $region5: #{tpu_custom_call.1} parent=1 // loop_body
      %s38 = ssub.s32 %s33, 1
      %s39 = ssub.s32 %s33, 2
      %s40 = sadd.s32 %s33, 1
      %s41 = ssub.s32 %s33, %s40
      %p42 = scmp.eq.s32.totalorder %s41, 0
      %s44 = sadd.s32 %s43, 1
      %s45 = scalar_select %p42, %s43, %s44
      %p48 = pneg %p42
      %p49 = scmp.eq.s32.totalorder %s33, 1
      %p50 = por %p48, %p49
      %p51 = scmp.ne.s32.totalorder %s43, %s46
      %p52 = scmp.eq.s32.totalorder %s33, 0
      %p53 = por %p51, %p52
      %p54 = scmp.ne.s32.totalorder %s43, %s46
      %p55 = scmp.eq.s32.totalorder %s38, 1
      %p56 = por %p54, %p55
      %p57 = scmp.ne.s32.totalorder %s46, %s47
      %p58 = scmp.eq.s32.totalorder %s38, 0
      %p59 = por %p57, %p58
      %p60 = scmp.ne.s32.totalorder %s46, %s47
      %p61 = scmp.eq.s32.totalorder %s39, 1
      %p62 = por %p60, %p61
      %p64 = scmp.ne.s32.totalorder %s47, %s63
      %p65 = scmp.eq.s32.totalorder %s39, 0
      %p66 = por %p64, %p65
      %s67 = ssub.s32 %s33, %s40
      %p68 = scmp.eq.s32.totalorder %s67, 0
      %s70 = sadd.s32 %s69, 1
      %s71 = scalar_select %p68, %s69, %s70
      %p74 = pneg %p68
      %p75 = scmp.eq.s32.totalorder %s33, 1
      %p76 = por %p74, %p75
      %p77 = scmp.ne.s32.totalorder %s69, %s72
      %p78 = scmp.eq.s32.totalorder %s33, 0
      %p79 = por %p77, %p78
      %p80 = scmp.ne.s32.totalorder %s69, %s72
      %p81 = scmp.eq.s32.totalorder %s38, 1
      %p82 = por %p80, %p81
      %p83 = scmp.ne.s32.totalorder %s72, %s73
      %p84 = scmp.eq.s32.totalorder %s38, 0
      %p85 = por %p83, %p84
      %p86 = scmp.ne.s32.totalorder %s72, %s73
      %p87 = scmp.eq.s32.totalorder %s39, 1
      %p88 = por %p86, %p87
      %p90 = scmp.ne.s32.totalorder %s73, %s89
      %p91 = scmp.eq.s32.totalorder %s39, 0
      %p92 = por %p90, %p91
      %s93 = ssub.s32 %s33, %s40
      %p94 = scmp.eq.s32.totalorder %s93, 0
      %s96 = sadd.s32 %s95, 1
      %s97 = scalar_select %p94, %s95, %s96
      %p100 = pneg %p94
      %p101 = scmp.eq.s32.totalorder %s33, 1
      %p102 = por %p100, %p101
      %p103 = scmp.ne.s32.totalorder %s95, %s98
      %p104 = scmp.eq.s32.totalorder %s33, 0
      %p105 = por %p103, %p104
      %p106 = scmp.ne.s32.totalorder %s95, %s98
      %p107 = scmp.eq.s32.totalorder %s38, 1
      %p108 = por %p106, %p107
      %p109 = scmp.ne.s32.totalorder %s98, %s99
      %p110 = scmp.eq.s32.totalorder %s38, 0
      %p111 = por %p109, %p110
      %p112 = scmp.ne.s32.totalorder %s98, %s99
      %p113 = scmp.eq.s32.totalorder %s39, 1
      %p114 = por %p112, %p113
      %p116 = scmp.ne.s32.totalorder %s99, %s115
      %p117 = scmp.eq.s32.totalorder %s39, 0
      %p118 = por %p116, %p117
      %s120 = sadd.s32 %s119, 1
      %p123 = scmp.eq.s32.totalorder %s33, 1
      %p124 = scmp.ne.s32.totalorder %s119, %s121
      %p125 = scmp.eq.s32.totalorder %s33, 0
      %p126 = por %p124, %p125
      %p127 = scmp.ne.s32.totalorder %s119, %s121
      %p128 = scmp.eq.s32.totalorder %s38, 1
      %p129 = por %p127, %p128
      %p130 = scmp.ne.s32.totalorder %s121, %s122
      %p131 = scmp.eq.s32.totalorder %s38, 0
      %p132 = por %p130, %p131
      %p133 = scmp.ne.s32.totalorder %s121, %s122
      %p134 = scmp.eq.s32.totalorder %s39, 1
      %p135 = por %p133, %p134
      %p137 = scmp.ne.s32.totalorder %s122, %s136
      %p138 = scmp.eq.s32.totalorder %s39, 0
      %p139 = por %p137, %p138
      %s141 = sadd.s32 %s140, 1
      %p144 = scmp.eq.s32.totalorder %s33, 1
      %p145 = scmp.ne.s32.totalorder %s140, %s142
      %p146 = scmp.eq.s32.totalorder %s33, 0
      %p147 = por %p145, %p146
      %p148 = scmp.ne.s32.totalorder %s140, %s142
      %p149 = scmp.eq.s32.totalorder %s38, 1
      %p150 = por %p148, %p149
      %p151 = scmp.ne.s32.totalorder %s142, %s143
      %p152 = scmp.eq.s32.totalorder %s38, 0
      %p153 = por %p151, %p152
      %p154 = scmp.ne.s32.totalorder %s142, %s143
      %p155 = scmp.eq.s32.totalorder %s39, 1
      %p156 = por %p154, %p155
      %p158 = scmp.ne.s32.totalorder %s143, %s157
      %p159 = scmp.eq.s32.totalorder %s39, 0
      %p160 = por %p158, %p159
      %s162 = sadd.s32 %s161, 1
      %p165 = scmp.eq.s32.totalorder %s33, 1
      %p166 = scmp.ne.s32.totalorder %s161, %s163
      %p167 = scmp.eq.s32.totalorder %s33, 0
      %p168 = por %p166, %p167
      %p169 = scmp.ne.s32.totalorder %s161, %s163
      %p170 = scmp.eq.s32.totalorder %s38, 1
      %p171 = por %p169, %p170
      %p172 = scmp.ne.s32.totalorder %s163, %s164
      %p173 = scmp.eq.s32.totalorder %s38, 0
      %p174 = por %p172, %p173
      %p175 = scmp.ne.s32.totalorder %s163, %s164
      %p176 = scmp.eq.s32.totalorder %s39, 1
      %p177 = por %p175, %p176
      %p179 = scmp.ne.s32.totalorder %s164, %s178
      %p180 = scmp.eq.s32.totalorder %s39, 0
      %p181 = por %p179, %p180
      %s183 = sadd.s32 %s182, 1
      %p186 = scmp.eq.s32.totalorder %s33, 1
      %p187 = scmp.ne.s32.totalorder %s182, %s184
      %p188 = scmp.eq.s32.totalorder %s33, 0
      %p189 = por %p187, %p188
      %p190 = scmp.ne.s32.totalorder %s182, %s184
      %p191 = scmp.eq.s32.totalorder %s38, 1
      %p192 = por %p190, %p191
      %p193 = scmp.ne.s32.totalorder %s184, %s185
      %p194 = scmp.eq.s32.totalorder %s38, 0
      %p195 = por %p193, %p194
      %p196 = scmp.ne.s32.totalorder %s184, %s185
      %p197 = scmp.eq.s32.totalorder %s39, 1
      %p198 = por %p196, %p197
      %p200 = scmp.ne.s32.totalorder %s185, %s199
      %p201 = scmp.eq.s32.totalorder %s39, 0
      %p202 = por %p200, %p201
      %s204 = sadd.s32 %s203, 1
      %p207 = scmp.eq.s32.totalorder %s33, 1
      %p208 = scmp.ne.s32.totalorder %s203, %s205
      %p209 = scmp.eq.s32.totalorder %s33, 0
      %p210 = por %p208, %p209
      %p211 = scmp.ne.s32.totalorder %s203, %s205
      %p212 = scmp.eq.s32.totalorder %s38, 1
      %p213 = por %p211, %p212
      %p214 = scmp.ne.s32.totalorder %s205, %s206
      %p215 = scmp.eq.s32.totalorder %s38, 0
      %p216 = por %p214, %p215
      %p217 = scmp.ne.s32.totalorder %s205, %s206
      %p218 = scmp.eq.s32.totalorder %s39, 1
      %p219 = por %p217, %p218
      %p221 = scmp.ne.s32.totalorder %s206, %s220
      %p222 = scmp.eq.s32.totalorder %s39, 0
      %p223 = por %p221, %p222
      %s225 = sadd.s32 %s224, 1
      %p228 = scmp.eq.s32.totalorder %s33, 1
      %p229 = scmp.ne.s32.totalorder %s224, %s226
      %p230 = scmp.eq.s32.totalorder %s33, 0
      %p231 = por %p229, %p230
      %p232 = scmp.ne.s32.totalorder %s224, %s226
      %p233 = scmp.eq.s32.totalorder %s38, 1
      %p234 = por %p232, %p233
      %p235 = scmp.ne.s32.totalorder %s226, %s227
      %p236 = scmp.eq.s32.totalorder %s38, 0
      %p237 = por %p235, %p236
      %p238 = scmp.ne.s32.totalorder %s226, %s227
      %p239 = scmp.eq.s32.totalorder %s39, 1
      %p240 = por %p238, %p239
      %p242 = scmp.ne.s32.totalorder %s227, %s241
      %p243 = scmp.eq.s32.totalorder %s39, 0
      %p244 = por %p242, %p243
      %s246 = sadd.s32 %s245, 1
      %p249 = scmp.eq.s32.totalorder %s33, 1
      %p250 = scmp.ne.s32.totalorder %s245, %s247
      %p251 = scmp.eq.s32.totalorder %s33, 0
      %p252 = por %p250, %p251
      %p253 = scmp.ne.s32.totalorder %s245, %s247
      %p254 = scmp.eq.s32.totalorder %s38, 1
      %p255 = por %p253, %p254
      %p256 = scmp.ne.s32.totalorder %s247, %s248
      %p257 = scmp.eq.s32.totalorder %s38, 0
      %p258 = por %p256, %p257
      %p259 = scmp.ne.s32.totalorder %s247, %s248
      %p260 = scmp.eq.s32.totalorder %s39, 1
      %p261 = por %p259, %p260
      %p263 = scmp.ne.s32.totalorder %s248, %s262
      %p264 = scmp.eq.s32.totalorder %s39, 0
      %p265 = por %p263, %p264
      %s267 = sadd.s32 %s266, 1
      %p270 = scmp.eq.s32.totalorder %s33, 1
      %p271 = scmp.ne.s32.totalorder %s266, %s268
      %p272 = scmp.eq.s32.totalorder %s33, 0
      %p273 = por %p271, %p272
      %p274 = scmp.ne.s32.totalorder %s266, %s268
      %p275 = scmp.eq.s32.totalorder %s38, 1
      %p276 = por %p274, %p275
      %p277 = scmp.ne.s32.totalorder %s268, %s269
      %p278 = scmp.eq.s32.totalorder %s38, 0
      %p279 = por %p277, %p278
      %p280 = scmp.ne.s32.totalorder %s268, %s269
      %p281 = scmp.eq.s32.totalorder %s39, 1
      %p282 = por %p280, %p281
      %p284 = scmp.ne.s32.totalorder %s269, %s283
      %p285 = scmp.eq.s32.totalorder %s39, 0
      %p286 = por %p284, %p285
      %s287 = ssub.s32 %s33, %s40
      %p288 = scmp.eq.s32.totalorder %s287, 0
      %s290 = sadd.s32 %s289, 1
      %s291 = scalar_select %p288, %s289, %s290
      %p294 = pneg %p288
      %p295 = scmp.eq.s32.totalorder %s33, 1
      %p296 = por %p294, %p295
      %p297 = scmp.ne.s32.totalorder %s289, %s292
      %p298 = scmp.eq.s32.totalorder %s33, 0
      %p299 = por %p297, %p298
      %p300 = scmp.ne.s32.totalorder %s289, %s292
      %p301 = scmp.eq.s32.totalorder %s38, 1
      %p302 = por %p300, %p301
      %p303 = scmp.ne.s32.totalorder %s292, %s293
      %p304 = scmp.eq.s32.totalorder %s38, 0
      %p305 = por %p303, %p304
      %p306 = scmp.ne.s32.totalorder %s292, %s293
      %p307 = scmp.eq.s32.totalorder %s39, 1
      %p308 = por %p306, %p307
      %p310 = scmp.ne.s32.totalorder %s293, %s309
      %p311 = scmp.eq.s32.totalorder %s39, 0
      %p312 = por %p310, %p311
      %s313 = ssub.s32 %s33, %s40
      %p314 = scmp.eq.s32.totalorder %s313, 0
      %s316 = sadd.s32 %s315, 1
      %s317 = scalar_select %p314, %s315, %s316
      %p320 = pneg %p314
      %p321 = scmp.eq.s32.totalorder %s33, 1
      %p322 = por %p320, %p321
      %p323 = scmp.ne.s32.totalorder %s315, %s318
      %p324 = scmp.eq.s32.totalorder %s33, 0
      %p325 = por %p323, %p324
      %p326 = scmp.ne.s32.totalorder %s315, %s318
      %p327 = scmp.eq.s32.totalorder %s38, 1
      %p328 = por %p326, %p327
      %p329 = scmp.ne.s32.totalorder %s318, %s319
      %p330 = scmp.eq.s32.totalorder %s38, 0
      %p331 = por %p329, %p330
      %p332 = scmp.ne.s32.totalorder %s318, %s319
      %p333 = scmp.eq.s32.totalorder %s39, 1
      %p334 = por %p332, %p333
      %p336 = scmp.ne.s32.totalorder %s319, %s335
      %p337 = scmp.eq.s32.totalorder %s39, 0
      %p338 = por %p336, %p337
      %p339 = scmp.le.s32.totalorder 1, %s33
      %p340 = scmp.lt.s32.totalorder %s33, 3
      %p341 = pnand %p339, %p340
      %p342 = pneg %p341
      // Predicated region
      $region9: #{tpu_custom_call.1} parent=5 // pred_check
        _
      $region10: #{tpu_custom_call.1} parent=5 // pred_check_branch
        %344 = sbr.rel (%p341) target = $region12
      $region11: #{tpu_custom_call.1} parent=5 // pred_region
        %s345 = ssub.s32 %s33, 1
        // Predicated region
        $region13: #{tpu_custom_call.1} parent=11 // pred_check
          %p346 = pneg %p132
        $region14: #{tpu_custom_call.1} parent=11 // pred_check_branch
          %348 = sbr.rel (%p346) target = $region16
        $region15: #{tpu_custom_call.1} parent=11 // pred_region
          %s350 = ssub.s32 512, 512
          %351 = vsyncadd [#allocation10], %s350
          %s352 = sshll.u32 [#allocation9], 4
          %s353 = int_to_ptr.vmem [resolvable:$true] %s352
          %358 = dma.hbm_to_vmem [thread:$0]  %s3, 512, %s353, [#allocation10], 128, 128, 8
        $region16: #{tpu_custom_call.1} parent=11 // pred_fallthru
          _
        // Predicated region
        $region17: #{tpu_custom_call.1} parent=11 // pred_check
          %p359 = pneg %p153
        $region18: #{tpu_custom_call.1} parent=11 // pred_check_branch
          %361 = sbr.rel (%p359) target = $region20
        $region19: #{tpu_custom_call.1} parent=11 // pred_region
          _
        $region20: #{tpu_custom_call.1} parent=11 // pred_fallthru
          _
        // Predicated region
        $region21: #{tpu_custom_call.1} parent=11 // pred_check
          %p362 = pneg %p174
        $region22: #{tpu_custom_call.1} parent=11 // pred_check_branch
          %364 = sbr.rel (%p362) target = $region24
        $region23: #{tpu_custom_call.1} parent=11 // pred_region
          %s366 = ssub.s32 512, 512
          %367 = vsyncadd [#allocation10], %s366
          %s368 = sshll.u32 [#allocation11], 4
          %s369 = int_to_ptr.vmem [resolvable:$true] %s368
          %374 = dma.hbm_to_vmem [thread:$0]  %s5, 512, %s369, [#allocation10], 128, 128, 8
        $region24: #{tpu_custom_call.1} parent=11 // pred_fallthru
          _
        // Predicated region
        $region25: #{tpu_custom_call.1} parent=11 // pred_check
          %p375 = pneg %p195
        $region26: #{tpu_custom_call.1} parent=11 // pred_check_branch
          %377 = sbr.rel (%p375) target = $region28
        $region27: #{tpu_custom_call.1} parent=11 // pred_region
          _
        $region28: #{tpu_custom_call.1} parent=11 // pred_fallthru
          _
        // Predicated region
        $region29: #{tpu_custom_call.1} parent=11 // pred_check
          %p378 = pneg %p216
        $region30: #{tpu_custom_call.1} parent=11 // pred_check_branch
          %380 = sbr.rel (%p378) target = $region32
        $region31: #{tpu_custom_call.1} parent=11 // pred_region
          %s382 = ssub.s32 512, 512
          %383 = vsyncadd [#allocation13], %s382
          %s384 = sshll.u32 [#allocation12], 4
          %s385 = int_to_ptr.vmem [resolvable:$true] %s384
          %390 = dma.hbm_to_vmem [thread:$0]  %s7, 512, %s385, [#allocation13], 128, 128, 8
        $region32: #{tpu_custom_call.1} parent=11 // pred_fallthru
          _
        // Predicated region
        $region33: #{tpu_custom_call.1} parent=11 // pred_check
          %p391 = pneg %p237
        $region34: #{tpu_custom_call.1} parent=11 // pred_check_branch
          %393 = sbr.rel (%p391) target = $region36
        $region35: #{tpu_custom_call.1} parent=11 // pred_region
          %s395 = ssub.s32 16, 16
          %396 = vsyncadd [#allocation13], %s395
          %s398 = sshll.u32 [#allocation14], 4
          %s399 = int_to_ptr.vmem [resolvable:$true] %s398
          %401 = dma.hbm_to_vmem [thread:$0]  %s8, 16, %s399, [#allocation13]
        $region36: #{tpu_custom_call.1} parent=11 // pred_fallthru
          _
        // Predicated region
        $region37: #{tpu_custom_call.1} parent=11 // pred_check
          %p402 = pneg %p258
        $region38: #{tpu_custom_call.1} parent=11 // pred_check_branch
          %404 = sbr.rel (%p402) target = $region40
        $region39: #{tpu_custom_call.1} parent=11 // pred_region
          _
        $region40: #{tpu_custom_call.1} parent=11 // pred_fallthru
          _
        // Predicated region
        $region41: #{tpu_custom_call.1} parent=11 // pred_check
          %p405 = pneg %p279
        $region42: #{tpu_custom_call.1} parent=11 // pred_check_branch
          %407 = sbr.rel (%p405) target = $region44
        $region43: #{tpu_custom_call.1} parent=11 // pred_region
          _
        $region44: #{tpu_custom_call.1} parent=11 // pred_fallthru
          _
      $region12: #{tpu_custom_call.1} parent=5 // pred_fallthru
        _
      %p408 = scmp.lt.s32.totalorder %s33, 2
      // Predicated region
      $region45: #{tpu_custom_call.1} parent=5 // pred_check
        %p409 = pneg %p408
      $region46: #{tpu_custom_call.1} parent=5 // pred_check_branch
        %411 = sbr.rel (%p409) target = $region48
      $region47: #{tpu_custom_call.1} parent=5 // pred_region
        // Predicated region
        $region49: #{tpu_custom_call.1} parent=47 // pred_check
          %p412 = pneg %p53
        $region50: #{tpu_custom_call.1} parent=47 // pred_check_branch
          %414 = sbr.rel (%p412) target = $region52
        $region51: #{tpu_custom_call.1} parent=47 // pred_region
          %s415 = sand.u32 %s43, 1
          %s416 = scalar_lea.sflag [#allocation4], %s415
          %s417 = sand.u32 %s43, 1
          %s418 = smul.addr %s417, 16
          %s419 = scalar_lea.vmem [#allocation3], %s418
          %s420 = smul.u32 2, %s33
          %s422 = ssub.s32 256, 256
          %423 = vsyncadd %s416, %s422
          %s424 = smul.addr %s420, 128
          %s425 = scalar_lea.hbm %s0, %s424
          %s426 = sshll.u32 %s419, 4
          %s427 = int_to_ptr.vmem [resolvable:$true] %s426
          %432 = dma.hbm_to_vmem [thread:$0]  %s425, 256, %s427, %s416, 128, 128, 8
        $region52: #{tpu_custom_call.1} parent=47 // pred_fallthru
          _
        // Predicated region
        $region53: #{tpu_custom_call.1} parent=47 // pred_check
          %p433 = pneg %p79
        $region54: #{tpu_custom_call.1} parent=47 // pred_check_branch
          %435 = sbr.rel (%p433) target = $region56
        $region55: #{tpu_custom_call.1} parent=47 // pred_region
          %s436 = sand.u32 %s33, 1
          %s437 = scalar_lea.sflag [#allocation7], %s436
          %s438 = sand.u32 %s69, 1
          %s439 = smul.addr %s438, 16
          %s440 = scalar_lea.vmem [#allocation6], %s439
          %s441 = smul.u32 2, %s33
          %s443 = ssub.s32 256, 256
          %444 = vsyncadd %s437, %s443
          %s445 = smul.addr %s441, 128
          %s446 = scalar_lea.hbm %s1, %s445
          %s447 = sshll.u32 %s440, 4
          %s448 = int_to_ptr.vmem [resolvable:$true] %s447
          %453 = dma.hbm_to_vmem [thread:$0]  %s446, 256, %s448, %s437, 128, 128, 8
        $region56: #{tpu_custom_call.1} parent=47 // pred_fallthru
          _
        // Predicated region
        $region57: #{tpu_custom_call.1} parent=47 // pred_check
          %p454 = pneg %p105
        $region58: #{tpu_custom_call.1} parent=47 // pred_check_branch
          %456 = sbr.rel (%p454) target = $region60
        $region59: #{tpu_custom_call.1} parent=47 // pred_region
          %s457 = sand.u32 %s33, 1
          %s458 = scalar_lea.sflag [#allocation7], %s457
          %s459 = sand.u32 %s95, 1
          %s460 = smul.addr %s459, 16
          %s461 = scalar_lea.vmem [#allocation8], %s460
          %s462 = smul.u32 2, %s33
          %s464 = ssub.s32 256, 256
          %465 = vsyncadd %s458, %s464
          %s466 = smul.addr %s462, 128
          %s467 = scalar_lea.hbm %s2, %s466
          %s468 = sshll.u32 %s461, 4
          %s469 = int_to_ptr.vmem [resolvable:$true] %s468
          %474 = dma.hbm_to_vmem [thread:$0]  %s467, 256, %s469, %s458, 128, 128, 8
        $region60: #{tpu_custom_call.1} parent=47 // pred_fallthru
          _
      $region48: #{tpu_custom_call.1} parent=5 // pred_fallthru
        _
      %p475 = scmp.le.s32.totalorder 1, %s33
      %p476 = scmp.lt.s32.totalorder %s33, 3
      %p477 = pnand %p475, %p476
      %p478 = pneg %p477
      // Predicated region
      $region61: #{tpu_custom_call.1} parent=5 // pred_check
        _
      $region62: #{tpu_custom_call.1} parent=5 // pred_check_branch
        %480 = sbr.rel (%p477) target = $region64
      $region63: #{tpu_custom_call.1} parent=5 // pred_region
        %s481 = ssub.s32 %s33, 1
        %s482 = sand.u32 %s46, 1
        %s483 = scalar_lea.sflag [#allocation4], %s482
        %s484 = sand.u32 %s46, 1
        %s485 = smul.addr %s484, 16
        %s486 = scalar_lea.vmem [#allocation3], %s485
        // Predicated region
        $region65: #{tpu_custom_call.1} parent=63 // pred_check
          %p487 = pneg %p59
        $region66: #{tpu_custom_call.1} parent=63 // pred_check_branch
          %489 = sbr.rel (%p487) target = $region68
        $region67: #{tpu_custom_call.1} parent=63 // pred_region
          %490 = dma.done %s483, 256
        $region68: #{tpu_custom_call.1} parent=63 // pred_fallthru
          _
        %s491 = sand.u32 %s38, 1
        %s492 = scalar_lea.sflag [#allocation7], %s491
        %s493 = sand.u32 %s72, 1
        %s494 = smul.addr %s493, 16
        %s495 = scalar_lea.vmem [#allocation6], %s494
        // Predicated region
        $region69: #{tpu_custom_call.1} parent=63 // pred_check
          %p496 = pneg %p85
        $region70: #{tpu_custom_call.1} parent=63 // pred_check_branch
          %498 = sbr.rel (%p496) target = $region72
        $region71: #{tpu_custom_call.1} parent=63 // pred_region
          %499 = dma.done %s492, 256
        $region72: #{tpu_custom_call.1} parent=63 // pred_fallthru
          _
        %s500 = sand.u32 %s38, 1
        %s501 = scalar_lea.sflag [#allocation7], %s500
        %s502 = sand.u32 %s98, 1
        %s503 = smul.addr %s502, 16
        %s504 = scalar_lea.vmem [#allocation8], %s503
        // Predicated region
        $region73: #{tpu_custom_call.1} parent=63 // pred_check
          %p505 = pneg %p111
        $region74: #{tpu_custom_call.1} parent=63 // pred_check_branch
          %507 = sbr.rel (%p505) target = $region76
        $region75: #{tpu_custom_call.1} parent=63 // pred_region
          %508 = dma.done %s501, 256
        $region76: #{tpu_custom_call.1} parent=63 // pred_fallthru
          _
        // Predicated region
        $region77: #{tpu_custom_call.1} parent=63 // pred_check
          %p509 = pneg %p132
        $region78: #{tpu_custom_call.1} parent=63 // pred_check_branch
          %511 = sbr.rel (%p509) target = $region80
        $region79: #{tpu_custom_call.1} parent=63 // pred_region
          %512 = dma.done [#allocation10], 512
        $region80: #{tpu_custom_call.1} parent=63 // pred_fallthru
          _
        // Predicated region
        $region81: #{tpu_custom_call.1} parent=63 // pred_check
          %p513 = pneg %p174
        $region82: #{tpu_custom_call.1} parent=63 // pred_check_branch
          %515 = sbr.rel (%p513) target = $region84
        $region83: #{tpu_custom_call.1} parent=63 // pred_region
          %516 = dma.done [#allocation10], 512
        $region84: #{tpu_custom_call.1} parent=63 // pred_fallthru
          _
        // Predicated region
        $region85: #{tpu_custom_call.1} parent=63 // pred_check
          %p517 = pneg %p216
        $region86: #{tpu_custom_call.1} parent=63 // pred_check_branch
          %519 = sbr.rel (%p517) target = $region88
        $region87: #{tpu_custom_call.1} parent=63 // pred_region
          %520 = dma.done [#allocation13], 512
        $region88: #{tpu_custom_call.1} parent=63 // pred_fallthru
          _
        // Predicated region
        $region89: #{tpu_custom_call.1} parent=63 // pred_check
          %p521 = pneg %p237
        $region90: #{tpu_custom_call.1} parent=63 // pred_check_branch
          %523 = sbr.rel (%p521) target = $region92
        $region91: #{tpu_custom_call.1} parent=63 // pred_region
          %524 = dma.done [#allocation13], 16
        $region92: #{tpu_custom_call.1} parent=63 // pred_fallthru
          _
        %s525 = sand.u32 %s46, 1
        %s526 = scalar_lea.sflag [#allocation4], %s525
        %s527 = sand.u32 %s46, 1
        %s528 = smul.addr %s527, 16
        %s529 = scalar_lea.vmem [#allocation3], %s528
        %p530 = pneg %p59
        %p531 = pneg %p56
        %s532 = sand.u32 %s38, 1
        %s533 = scalar_lea.sflag [#allocation7], %s532
        %s534 = sand.u32 %s72, 1
        %s535 = smul.addr %s534, 16
        %s536 = scalar_lea.vmem [#allocation6], %s535
        %p537 = pneg %p85
        %p538 = pneg %p82
        %s539 = sand.u32 %s38, 1
        %s540 = scalar_lea.sflag [#allocation7], %s539
        %s541 = sand.u32 %s98, 1
        %s542 = smul.addr %s541, 16
        %s543 = scalar_lea.vmem [#allocation8], %s542
        %p544 = pneg %p111
        %p545 = pneg %p108
        %p546 = pneg %p132
        %p547 = pneg %p129
        %p548 = pneg %p153
        %p549 = pneg %p150
        %p550 = pneg %p174
        %p551 = pneg %p171
        %p552 = pneg %p195
        %p553 = pneg %p192
        %p554 = pneg %p216
        %p555 = pneg %p213
        %p556 = pneg %p237
        %p557 = pneg %p234
        %p558 = pneg %p258
        %p559 = pneg %p255
        %p560 = pneg %p279
        %p561 = pneg %p276
        %p562 = pneg %p305
        %p563 = pneg %p302
        %s564 = sand.u32 %s292, 1
        %s565 = scalar_lea.sflag [#allocation5], %s564
        %s566 = sand.u32 %s292, 1
        %s567 = smul.addr %s566, 16
        %s568 = scalar_lea.vmem [#allocation15], %s567
        %p569 = pneg %p331
        %p570 = pneg %p328
        %s571 = sand.u32 %s318, 1
        %s572 = scalar_lea.sflag [#allocation17], %s571
        %s573 = sand.u32 %s318, 1
        %s574 = smul.addr %s573, 64
        %s575 = scalar_lea.vmem [#allocation16], %s574
        %s576 = smul.u32 2, %s38
        %s577 = smul.u32 2, %s38
        %s578 = smul.u32 2, %s38
        %s579 = smul.u32 2, %s38
        %s580 = smul.u32 2, %s38
        %v581 = vld [vmem:[%s486] sm:$0xff]
        %v582 = vld [vmem:[%s486 + $0x8] sm:$0xff]
        %v583 = vld [vmem:[%s495] sm:$0xff]
        %v584 = vld [vmem:[%s495 + $0x8] sm:$0xff]
        %v585 = vld [vmem:[%s504] sm:$0xff]
        %v586 = vld [vmem:[%s504 + $0x8] sm:$0xff]
        %v587 = vld [vmem:[#allocation9] sm:$0xff]
        %v588 = vld [vmem:[#allocation9 + $0x8] sm:$0xff]
        %v589 = vld [vmem:[#allocation9 + $0x10] sm:$0xff]
        %v590 = vld [vmem:[#allocation9 + $0x18] sm:$0xff]
        %v591 = vld [vmem:[%s4] sm:$0x1]
        %v593 = vlaneseq
        %v594 = vshrl.u32 %v593, 7
        %v595 = vsub.s32 0, %v594
        %v596 = vrot.slane %v591, %v595
        %vm598 = vcmask 261120
        %v600 = vsel %vm598, %v581, 0
        %v603 = vsel %vm598, %v582, 0
        %605 = vmatprep.subr.mxu0 0.0
        %606 = vmatpush1.msra.mxu0 %v587
        %607 = vmatprep.subr.mxu0 0.0
        %608 = vmatpush1.msra.mxu0 %v588
        %609 = vmatprep.subr.mxu0 0.0
        %610 = vmatpush1.msra.mxu0 %v589
        %611 = vmatprep.subr.mxu0 0.0
        %612 = vmatpush1.msra.mxu0 %v590
        %613 = vmatprep.subr.mxu0 0.0
        %614 = vmatpush1.msra.mxu0 0.0
        %615 = vmatprep.subr.mxu0 0.0
        %616 = vmatpush1.msra.mxu0 0.0
        %617 = vmatprep.subr.mxu0 0.0
        %618 = vmatpush1.msra.mxu0 0.0
        %619 = vmatprep.subr.mxu0 0.0
        %620 = vmatpush1.msra.mxu0 0.0
        %621 = vmatprep.subr.mxu0 0.0
        %622 = vmatpush1.msra.mxu0 0.0
        %623 = vmatprep.subr.mxu0 0.0
        %624 = vmatpush1.msra.mxu0 0.0
        %625 = vmatprep.subr.mxu0 0.0
        %626 = vmatpush1.msra.mxu0 0.0
        %627 = vmatprep.subr.mxu0 0.0
        %628 = vmatpush1.msra.mxu0 0.0
        %629 = vmatprep.subr.mxu0 0.0
        %630 = vmatpush1.msra.mxu0 0.0
        %631 = vmatprep.subr.mxu0 0.0
        %632 = vmatpush1.msra.mxu0 0.0
        %633 = vmatprep.subr.mxu0 0.0
        %634 = vmatpush1.msra.mxu0 0.0
        %635 = vmatprep.subr.mxu0 0.0
        %636 = vmatpush1.msra.mxu0 0.0
        %637 = vmatprep.subr.mxu0 0.0
        %638 = vmatpush1.msra.mxu0 0.0
        %639 = vmatprep.subr.mxu0 0.0
        %640 = vmatpush1.msra.mxu0 0.0
        %641 = vmatprep.subr.mxu0 0.0
        %642 = vmatpush1.msra.mxu0 0.0
        %643 = vmatprep.subr.mxu0 0.0
        %644 = vmatpush1.msra.mxu0 0.0
        %645 = vmatprep.subr.mxu0 0.0
        %646 = vmatpush1.msra.mxu0 0.0
        %647 = vmatprep.subr.mxu0 0.0
        %648 = vmatpush1.msra.mxu0 0.0
        %649 = vmatprep.subr.mxu0 0.0
        %650 = vmatpush1.msra.mxu0 0.0
        %651 = vmatprep.subr.mxu0 0.0
        %652 = vmatpush1.msra.mxu0 0.0
        %653 = vmatprep.subr.mxu0 0.0
        %654 = vmatpush1.msra.mxu0 0.0
        %655 = vmatprep.subr.mxu0 0.0
        %656 = vmatpush1.msra.mxu0 0.0
        %657 = vmatprep.subr.mxu0 0.0
        %658 = vmatpush1.msra.mxu0 0.0
        %659 = vmatprep.subr.mxu0 0.0
        %660 = vmatpush1.msra.mxu0 0.0
        %661 = vmatprep.subr.mxu0 0.0
        %662 = vmatpush1.msra.mxu0 0.0
        %663 = vmatprep.subr.mxu0 0.0
        %664 = vmatpush1.msra.mxu0 0.0
        %665 = vmatprep.subr.mxu0 0.0
        %666 = vmatpush1.msra.mxu0 0.0
        %667 = vmatprep.subr.mxu0 0.0
        %668 = vmatpush1.msra.mxu0 0.0
        %669 = vmatprep.mubr.f32.mxu0 0.0
        %670 = vmatmul.mubr.f32.gmra.mrb[0].mxu0 %v600
        %v671 = vpop.f32.mrb[0].mxu0
        %v672 = vadd.f32 %v596, %v671
        %v673 = vpop.f32.mrb[0].mxu0
        %674 = vmatprep.mubr.f32.mxu0 0.0
        %675 = vmatmul.mubr.f32.gmra.mrb[0].mxu0 %v603
        %v676 = vpop.f32.mrb[0].mxu0
        %v677 = vadd.f32 %v596, %v676
        %v678 = vpop.f32.mrb[0].mxu0
        %679 = vdwg.mxu0
        %v680 = vmul.f32 %v672, 0.35355338
        %v681 = vmul.f32 %v677, 0.35355338
        %v682 = vld [vmem:[#allocation11] sm:$0xff]
        %v683 = vld [vmem:[#allocation11 + $0x8] sm:$0xff]
        %v684 = vld [vmem:[#allocation11 + $0x10] sm:$0xff]
        %v685 = vld [vmem:[#allocation11 + $0x18] sm:$0xff]
        %v686 = vld [vmem:[%s6] sm:$0x1]
        %v688 = vlaneseq
        %v689 = vshrl.u32 %v688, 7
        %v690 = vsub.s32 0, %v689
        %v691 = vrot.slane %v686, %v690
        %v694 = vsel %vm598, %v583, 0
        %v697 = vsel %vm598, %v584, 0
        %699 = vmatprep.subr.mxu0 0.0
        %700 = vmatpush1.msra.mxu0 %v682
        %701 = vmatprep.subr.mxu0 0.0
        %702 = vmatpush1.msra.mxu0 %v683
        %703 = vmatprep.subr.mxu0 0.0
        %704 = vmatpush1.msra.mxu0 %v684
        %705 = vmatprep.subr.mxu0 0.0
        %706 = vmatpush1.msra.mxu0 %v685
        %707 = vmatprep.subr.mxu0 0.0
        %708 = vmatpush1.msra.mxu0 0.0
        %709 = vmatprep.subr.mxu0 0.0
        %710 = vmatpush1.msra.mxu0 0.0
        %711 = vmatprep.subr.mxu0 0.0
        %712 = vmatpush1.msra.mxu0 0.0
        %713 = vmatprep.subr.mxu0 0.0
        %714 = vmatpush1.msra.mxu0 0.0
        %715 = vmatprep.subr.mxu0 0.0
        %716 = vmatpush1.msra.mxu0 0.0
        %717 = vmatprep.subr.mxu0 0.0
        %718 = vmatpush1.msra.mxu0 0.0
        %719 = vmatprep.subr.mxu0 0.0
        %720 = vmatpush1.msra.mxu0 0.0
        %721 = vmatprep.subr.mxu0 0.0
        %722 = vmatpush1.msra.mxu0 0.0
        %723 = vmatprep.subr.mxu0 0.0
        %724 = vmatpush1.msra.mxu0 0.0
        %725 = vmatprep.subr.mxu0 0.0
        %726 = vmatpush1.msra.mxu0 0.0
        %727 = vmatprep.subr.mxu0 0.0
        %728 = vmatpush1.msra.mxu0 0.0
        %729 = vmatprep.subr.mxu0 0.0
        %730 = vmatpush1.msra.mxu0 0.0
        %731 = vmatprep.subr.mxu0 0.0
        %732 = vmatpush1.msra.mxu0 0.0
        %733 = vmatprep.subr.mxu0 0.0
        %734 = vmatpush1.msra.mxu0 0.0
        %735 = vmatprep.subr.mxu0 0.0
        %736 = vmatpush1.msra.mxu0 0.0
        %737 = vmatprep.subr.mxu0 0.0
        %738 = vmatpush1.msra.mxu0 0.0
        %739 = vmatprep.subr.mxu0 0.0
        %740 = vmatpush1.msra.mxu0 0.0
        %741 = vmatprep.subr.mxu0 0.0
        %742 = vmatpush1.msra.mxu0 0.0
        %743 = vmatprep.subr.mxu0 0.0
        %744 = vmatpush1.msra.mxu0 0.0
        %745 = vmatprep.subr.mxu0 0.0
        %746 = vmatpush1.msra.mxu0 0.0
        %747 = vmatprep.subr.mxu0 0.0
        %748 = vmatpush1.msra.mxu0 0.0
        %749 = vmatprep.subr.mxu0 0.0
        %750 = vmatpush1.msra.mxu0 0.0
        %751 = vmatprep.subr.mxu0 0.0
        %752 = vmatpush1.msra.mxu0 0.0
        %753 = vmatprep.subr.mxu0 0.0
        %754 = vmatpush1.msra.mxu0 0.0
        %755 = vmatprep.subr.mxu0 0.0
        %756 = vmatpush1.msra.mxu0 0.0
        %757 = vmatprep.subr.mxu0 0.0
        %758 = vmatpush1.msra.mxu0 0.0
        %759 = vmatprep.subr.mxu0 0.0
        %760 = vmatpush1.msra.mxu0 0.0
        %761 = vmatprep.subr.mxu0 0.0
        %762 = vmatpush1.msra.mxu0 0.0
        %763 = vmatprep.mubr.f32.mxu0 0.0
        %764 = vmatmul.mubr.f32.gmra.mrb[0].mxu0 %v694
        %v765 = vpop.f32.mrb[0].mxu0
        %v766 = vadd.f32 %v691, %v765
        %v767 = vpop.f32.mrb[0].mxu0
        %768 = vmatprep.mubr.f32.mxu0 0.0
        %769 = vmatmul.mubr.f32.gmra.mrb[0].mxu0 %v697
        %v770 = vpop.f32.mrb[0].mxu0
        %v771 = vadd.f32 %v691, %v770
        %v772 = vpop.f32.mrb[0].mxu0
        %773 = vdwg.mxu0
        %v774 = vld [vmem:[#allocation12] sm:$0xff]
        %v775 = vld [vmem:[#allocation12 + $0x8] sm:$0xff]
        %v776 = vld [vmem:[#allocation12 + $0x10] sm:$0xff]
        %v777 = vld [vmem:[#allocation12 + $0x18] sm:$0xff]
        %v778 = vld [vmem:[#allocation14] sm:$0x1]
        %v780 = vlaneseq
        %v781 = vshrl.u32 %v780, 7
        %v782 = vsub.s32 0, %v781
        %v783 = vrot.slane %v778, %v782
        %v786 = vsel %vm598, %v585, 0
        %v789 = vsel %vm598, %v586, 0
        %791 = vmatprep.subr.mxu0 0.0
        %792 = vmatpush1.msra.mxu0 %v774
        %793 = vmatprep.subr.mxu0 0.0
        %794 = vmatpush1.msra.mxu0 %v775
        %795 = vmatprep.subr.mxu0 0.0
        %796 = vmatpush1.msra.mxu0 %v776
        %797 = vmatprep.subr.mxu0 0.0
        %798 = vmatpush1.msra.mxu0 %v777
        %799 = vmatprep.subr.mxu0 0.0
        %800 = vmatpush1.msra.mxu0 0.0
        %801 = vmatprep.subr.mxu0 0.0
        %802 = vmatpush1.msra.mxu0 0.0
        %803 = vmatprep.subr.mxu0 0.0
        %804 = vmatpush1.msra.mxu0 0.0
        %805 = vmatprep.subr.mxu0 0.0
        %806 = vmatpush1.msra.mxu0 0.0
        %807 = vmatprep.subr.mxu0 0.0
        %808 = vmatpush1.msra.mxu0 0.0
        %809 = vmatprep.subr.mxu0 0.0
        %810 = vmatpush1.msra.mxu0 0.0
        %811 = vmatprep.subr.mxu0 0.0
        %812 = vmatpush1.msra.mxu0 0.0
        %813 = vmatprep.subr.mxu0 0.0
        %814 = vmatpush1.msra.mxu0 0.0
        %815 = vmatprep.subr.mxu0 0.0
        %816 = vmatpush1.msra.mxu0 0.0
        %817 = vmatprep.subr.mxu0 0.0
        %818 = vmatpush1.msra.mxu0 0.0
        %819 = vmatprep.subr.mxu0 0.0
        %820 = vmatpush1.msra.mxu0 0.0
        %821 = vmatprep.subr.mxu0 0.0
        %822 = vmatpush1.msra.mxu0 0.0
        %823 = vmatprep.subr.mxu0 0.0
        %824 = vmatpush1.msra.mxu0 0.0
        %825 = vmatprep.subr.mxu0 0.0
        %826 = vmatpush1.msra.mxu0 0.0
        %827 = vmatprep.subr.mxu0 0.0
        %828 = vmatpush1.msra.mxu0 0.0
        %829 = vmatprep.subr.mxu0 0.0
        %830 = vmatpush1.msra.mxu0 0.0
        %831 = vmatprep.subr.mxu0 0.0
        %832 = vmatpush1.msra.mxu0 0.0
        %833 = vmatprep.subr.mxu0 0.0
        %834 = vmatpush1.msra.mxu0 0.0
        %835 = vmatprep.subr.mxu0 0.0
        %836 = vmatpush1.msra.mxu0 0.0
        %837 = vmatprep.subr.mxu0 0.0
        %838 = vmatpush1.msra.mxu0 0.0
        %839 = vmatprep.subr.mxu0 0.0
        %840 = vmatpush1.msra.mxu0 0.0
        %841 = vmatprep.subr.mxu0 0.0
        %842 = vmatpush1.msra.mxu0 0.0
        %843 = vmatprep.subr.mxu0 0.0
        %844 = vmatpush1.msra.mxu0 0.0
        %845 = vmatprep.subr.mxu0 0.0
        %846 = vmatpush1.msra.mxu0 0.0
        %847 = vmatprep.subr.mxu0 0.0
        %848 = vmatpush1.msra.mxu0 0.0
        %849 = vmatprep.subr.mxu0 0.0
        %850 = vmatpush1.msra.mxu0 0.0
        %851 = vmatprep.subr.mxu0 0.0
        %852 = vmatpush1.msra.mxu0 0.0
        %853 = vmatprep.subr.mxu0 0.0
        %854 = vmatpush1.msra.mxu0 0.0
        %855 = vmatprep.mubr.f32.mxu0 0.0
        %856 = vmatmul.mubr.f32.gmra.mrb[0].mxu0 %v786
        %v857 = vpop.f32.mrb[0].mxu0
        %v858 = vadd.f32 %v783, %v857
        %v859 = vpop.f32.mrb[0].mxu0
        %860 = vmatprep.mubr.f32.mxu0 0.0
        %861 = vmatmul.mubr.f32.gmra.mrb[0].mxu0 %v789
        %v862 = vpop.f32.mrb[0].mxu0
        %v863 = vadd.f32 %v783, %v862
        %v864 = vpop.f32.mrb[0].mxu0
        %865 = vdwg.mxu0
        %vm866 = vcmask 64512
        %v868 = vsel %vm866, %v680, 0
        %v871 = vsel %vm866, %v766, 0
        %873 = vmatprep.subr.mxu0 0.0
        %874 = vmatpush1.xpose.msra.mxu0 %v871
        %875 = vmatprep.subr.mxu0 0.0
        %876 = vmatpush1.xpose.msra.mxu0 0.0
        %877 = vmatprep.subr.mxu0 0.0
        %878 = vmatpush1.xpose.msra.mxu0 0.0
        %879 = vmatprep.subr.mxu0 0.0
        %880 = vmatpush1.xpose.msra.mxu0 0.0
        %881 = vmatprep.subr.mxu0 0.0
        %882 = vmatpush1.xpose.msra.mxu0 0.0
        %883 = vmatprep.subr.mxu0 0.0
        %884 = vmatpush1.xpose.msra.mxu0 0.0
        %885 = vmatprep.subr.mxu0 0.0
        %886 = vmatpush1.xpose.msra.mxu0 0.0
        %887 = vmatprep.subr.mxu0 0.0
        %888 = vmatpush1.xpose.msra.mxu0 0.0
        %889 = vmatprep.subr.mxu0 0.0
        %890 = vmatpush1.xpose.msra.mxu0 0.0
        %891 = vmatprep.subr.mxu0 0.0
        %892 = vmatpush1.xpose.msra.mxu0 0.0
        %893 = vmatprep.subr.mxu0 0.0
        %894 = vmatpush1.xpose.msra.mxu0 0.0
        %895 = vmatprep.subr.mxu0 0.0
        %896 = vmatpush1.xpose.msra.mxu0 0.0
        %897 = vmatprep.subr.mxu0 0.0
        %898 = vmatpush1.xpose.msra.mxu0 0.0
        %899 = vmatprep.subr.mxu0 0.0
        %900 = vmatpush1.xpose.msra.mxu0 0.0
        %901 = vmatprep.subr.mxu0 0.0
        %902 = vmatpush1.xpose.msra.mxu0 0.0
        %903 = vmatprep.subr.mxu0 0.0
        %904 = vmatpush1.xpose.msra.mxu0 0.0
        %905 = vmatprep.subr.mxu0 0.0
        %906 = vmatpush1.xpose.msra.mxu0 0.0
        %907 = vmatprep.subr.mxu0 0.0
        %908 = vmatpush1.xpose.msra.mxu0 0.0
        %909 = vmatprep.subr.mxu0 0.0
        %910 = vmatpush1.xpose.msra.mxu0 0.0
        %911 = vmatprep.subr.mxu0 0.0
        %912 = vmatpush1.xpose.msra.mxu0 0.0
        %913 = vmatprep.subr.mxu0 0.0
        %914 = vmatpush1.xpose.msra.mxu0 0.0
        %915 = vmatprep.subr.mxu0 0.0
        %916 = vmatpush1.xpose.msra.mxu0 0.0
        %917 = vmatprep.subr.mxu0 0.0
        %918 = vmatpush1.xpose.msra.mxu0 0.0
        %919 = vmatprep.subr.mxu0 0.0
        %920 = vmatpush1.xpose.msra.mxu0 0.0
        %921 = vmatprep.subr.mxu0 0.0
        %922 = vmatpush1.xpose.msra.mxu0 0.0
        %923 = vmatprep.subr.mxu0 0.0
        %924 = vmatpush1.xpose.msra.mxu0 0.0
        %925 = vmatprep.subr.mxu0 0.0
        %926 = vmatpush1.xpose.msra.mxu0 0.0
        %927 = vmatprep.subr.mxu0 0.0
        %928 = vmatpush1.xpose.msra.mxu0 0.0
        %929 = vmatprep.subr.mxu0 0.0
        %930 = vmatpush1.xpose.msra.mxu0 0.0
        %931 = vmatprep.subr.mxu0 0.0
        %932 = vmatpush1.xpose.msra.mxu0 0.0
        %933 = vmatprep.subr.mxu0 0.0
        %934 = vmatpush1.xpose.msra.mxu0 0.0
        %935 = vmatprep.subr.mxu0 0.0
        %936 = vmatpush1.xpose.msra.mxu0 0.0
        %937 = vmatprep.mubr.f32.mxu0 0.0
        %938 = vmatmul.mubr.f32.gmra.mrb[0].mxu0 %v868
        %v939 = vpop.f32.mrb[0].mxu0
        %v940 = vadd.f32 0.0, %v939
        %v941 = vpop.f32.mrb[0].mxu0
        %942 = vdwg.mxu0
        %v944 = vsel %vm866, %v681, 0
        %v947 = vsel %vm866, %v771, 0
        %949 = vmatprep.subr.mxu0 0.0
        %950 = vmatpush1.xpose.msra.mxu0 %v947
        %951 = vmatprep.subr.mxu0 0.0
        %952 = vmatpush1.xpose.msra.mxu0 0.0
        %953 = vmatprep.subr.mxu0 0.0
        %954 = vmatpush1.xpose.msra.mxu0 0.0
        %955 = vmatprep.subr.mxu0 0.0
        %956 = vmatpush1.xpose.msra.mxu0 0.0
        %957 = vmatprep.subr.mxu0 0.0
        %958 = vmatpush1.xpose.msra.mxu0 0.0
        %959 = vmatprep.subr.mxu0 0.0
        %960 = vmatpush1.xpose.msra.mxu0 0.0
        %961 = vmatprep.subr.mxu0 0.0
        %962 = vmatpush1.xpose.msra.mxu0 0.0
        %963 = vmatprep.subr.mxu0 0.0
        %964 = vmatpush1.xpose.msra.mxu0 0.0
        %965 = vmatprep.subr.mxu0 0.0
        %966 = vmatpush1.xpose.msra.mxu0 0.0
        %967 = vmatprep.subr.mxu0 0.0
        %968 = vmatpush1.xpose.msra.mxu0 0.0
        %969 = vmatprep.subr.mxu0 0.0
        %970 = vmatpush1.xpose.msra.mxu0 0.0
        %971 = vmatprep.subr.mxu0 0.0
        %972 = vmatpush1.xpose.msra.mxu0 0.0
        %973 = vmatprep.subr.mxu0 0.0
        %974 = vmatpush1.xpose.msra.mxu0 0.0
        %975 = vmatprep.subr.mxu0 0.0
        %976 = vmatpush1.xpose.msra.mxu0 0.0
        %977 = vmatprep.subr.mxu0 0.0
        %978 = vmatpush1.xpose.msra.mxu0 0.0
        %979 = vmatprep.subr.mxu0 0.0
        %980 = vmatpush1.xpose.msra.mxu0 0.0
        %981 = vmatprep.subr.mxu0 0.0
        %982 = vmatpush1.xpose.msra.mxu0 0.0
        %983 = vmatprep.subr.mxu0 0.0
        %984 = vmatpush1.xpose.msra.mxu0 0.0
        %985 = vmatprep.subr.mxu0 0.0
        %986 = vmatpush1.xpose.msra.mxu0 0.0
        %987 = vmatprep.subr.mxu0 0.0
        %988 = vmatpush1.xpose.msra.mxu0 0.0
        %989 = vmatprep.subr.mxu0 0.0
        %990 = vmatpush1.xpose.msra.mxu0 0.0
        %991 = vmatprep.subr.mxu0 0.0
        %992 = vmatpush1.xpose.msra.mxu0 0.0
        %993 = vmatprep.subr.mxu0 0.0
        %994 = vmatpush1.xpose.msra.mxu0 0.0
        %995 = vmatprep.subr.mxu0 0.0
        %996 = vmatpush1.xpose.msra.mxu0 0.0
        %997 = vmatprep.subr.mxu0 0.0
        %998 = vmatpush1.xpose.msra.mxu0 0.0
        %999 = vmatprep.subr.mxu0 0.0
        %1000 = vmatpush1.xpose.msra.mxu0 0.0
        %1001 = vmatprep.subr.mxu0 0.0
        %1002 = vmatpush1.xpose.msra.mxu0 0.0
        %1003 = vmatprep.subr.mxu0 0.0
        %1004 = vmatpush1.xpose.msra.mxu0 0.0
        %1005 = vmatprep.subr.mxu0 0.0
        %1006 = vmatpush1.xpose.msra.mxu0 0.0
        %1007 = vmatprep.subr.mxu0 0.0
        %1008 = vmatpush1.xpose.msra.mxu0 0.0
        %1009 = vmatprep.subr.mxu0 0.0
        %1010 = vmatpush1.xpose.msra.mxu0 0.0
        %1011 = vmatprep.subr.mxu0 0.0
        %1012 = vmatpush1.xpose.msra.mxu0 0.0
        %1013 = vmatprep.mubr.f32.mxu0 0.0
        %1014 = vmatmul.mubr.f32.gmra.mrb[0].mxu0 %v944
        %v1015 = vpop.f32.mrb[0].mxu0
        %v1016 = vadd.f32 0.0, %v1015
        %v1017 = vpop.f32.mrb[0].mxu0
        %1018 = vdwg.mxu0
        %v1019 = vsel %vm866, %v940, -inf
        %1020 = vmax.xlane.f32.xlu0 %v1019
        %v1021 = vpop.xlane.xlu0 %1020
        %v1022 = vsel %vm866, %v1016, -inf
        %1023 = vmax.xlane.f32.xlu0 %v1022
        %v1024 = vpop.xlane.xlu0 %1023
        %v1025 = vsub.f32 %v940, %v1021
        %v1026 = vsub.f32 %v1016, %v1024
        %v1027 = vmul.f32 %v1025, 1.442695
        %v1028 = vpow.pop %v1027
        %v1029 = vmul.f32 %v1026, 1.442695
        %v1030 = vpow.pop %v1029
        %v1031 = vsel %vm866, %v1028, 0.0
        %1032 = vadd.xlane.f32.xlu0 %v1031
        %v1033 = vpop.xlane.xlu0 %1032
        %v1034 = vsel %vm866, %v1030, 0.0
        %1035 = vadd.xlane.f32.xlu0 %v1034
        %v1036 = vpop.xlane.xlu0 %1035
        %v1037 = vrcp.pop %v1033
        %v1038 = vrcp.pop %v1036
        %v1039 = vmul.f32 %v1028, %v1037
        %v1040 = vmul.f32 %v1030, %v1038
        %1041 = vst.msk [vmem:[%s575] sm:$0xff] %vm866, %v1039
        %1042 = vst.msk [vmem:[%s575 + $0x20] sm:$0xff] %vm866, %v1040
        %v1044 = vsel %vm866, %v1039, 0
        %1046 = vmatprep.subr.mxu0 0.0
        %1047 = vmatpush1.msra.mxu0 %v858
        %1048 = vmatprep.subr.mxu0 0.0
        %1049 = vmatpush1.msra.mxu0 0.0
        %1050 = vmatprep.subr.mxu0 0.0
        %1051 = vmatpush1.msra.mxu0 0.0
        %1052 = vmatprep.subr.mxu0 0.0
        %1053 = vmatpush1.msra.mxu0 0.0
        %1054 = vmatprep.subr.mxu0 0.0
        %1055 = vmatpush1.msra.mxu0 0.0
        %1056 = vmatprep.subr.mxu0 0.0
        %1057 = vmatpush1.msra.mxu0 0.0
        %1058 = vmatprep.subr.mxu0 0.0
        %1059 = vmatpush1.msra.mxu0 0.0
        %1060 = vmatprep.subr.mxu0 0.0
        %1061 = vmatpush1.msra.mxu0 0.0
        %1062 = vmatprep.subr.mxu0 0.0
        %1063 = vmatpush1.msra.mxu0 0.0
        %1064 = vmatprep.subr.mxu0 0.0
        %1065 = vmatpush1.msra.mxu0 0.0
        %1066 = vmatprep.subr.mxu0 0.0
        %1067 = vmatpush1.msra.mxu0 0.0
        %1068 = vmatprep.subr.mxu0 0.0
        %1069 = vmatpush1.msra.mxu0 0.0
        %1070 = vmatprep.subr.mxu0 0.0
        %1071 = vmatpush1.msra.mxu0 0.0
        %1072 = vmatprep.subr.mxu0 0.0
        %1073 = vmatpush1.msra.mxu0 0.0
        %1074 = vmatprep.subr.mxu0 0.0
        %1075 = vmatpush1.msra.mxu0 0.0
        %1076 = vmatprep.subr.mxu0 0.0
        %1077 = vmatpush1.msra.mxu0 0.0
        %1078 = vmatprep.subr.mxu0 0.0
        %1079 = vmatpush1.msra.mxu0 0.0
        %1080 = vmatprep.subr.mxu0 0.0
        %1081 = vmatpush1.msra.mxu0 0.0
        %1082 = vmatprep.subr.mxu0 0.0
        %1083 = vmatpush1.msra.mxu0 0.0
        %1084 = vmatprep.subr.mxu0 0.0
        %1085 = vmatpush1.msra.mxu0 0.0
        %1086 = vmatprep.subr.mxu0 0.0
        %1087 = vmatpush1.msra.mxu0 0.0
        %1088 = vmatprep.subr.mxu0 0.0
        %1089 = vmatpush1.msra.mxu0 0.0
        %1090 = vmatprep.subr.mxu0 0.0
        %1091 = vmatpush1.msra.mxu0 0.0
        %1092 = vmatprep.subr.mxu0 0.0
        %1093 = vmatpush1.msra.mxu0 0.0
        %1094 = vmatprep.subr.mxu0 0.0
        %1095 = vmatpush1.msra.mxu0 0.0
        %1096 = vmatprep.subr.mxu0 0.0
        %1097 = vmatpush1.msra.mxu0 0.0
        %1098 = vmatprep.subr.mxu0 0.0
        %1099 = vmatpush1.msra.mxu0 0.0
        %1100 = vmatprep.subr.mxu0 0.0
        %1101 = vmatpush1.msra.mxu0 0.0
        %1102 = vmatprep.subr.mxu0 0.0
        %1103 = vmatpush1.msra.mxu0 0.0
        %1104 = vmatprep.subr.mxu0 0.0
        %1105 = vmatpush1.msra.mxu0 0.0
        %1106 = vmatprep.subr.mxu0 0.0
        %1107 = vmatpush1.msra.mxu0 0.0
        %1108 = vmatprep.subr.mxu0 0.0
        %1109 = vmatpush1.msra.mxu0 0.0
        %1110 = vmatprep.mubr.f32.mxu0 0.0
        %1111 = vmatmul.mubr.f32.gmra.mrb[0].mxu0 %v1044
        %v1112 = vpop.f32.mrb[0].mxu0
        %v1113 = vadd.f32 0.0, %v1112
        %v1114 = vpop.f32.mrb[0].mxu0
        %1115 = vdwg.mxu0
        %v1117 = vsel %vm866, %v1040, 0
        %1119 = vmatprep.subr.mxu0 0.0
        %1120 = vmatpush1.msra.mxu0 %v863
        %1121 = vmatprep.subr.mxu0 0.0
        %1122 = vmatpush1.msra.mxu0 0.0
        %1123 = vmatprep.subr.mxu0 0.0
        %1124 = vmatpush1.msra.mxu0 0.0
        %1125 = vmatprep.subr.mxu0 0.0
        %1126 = vmatpush1.msra.mxu0 0.0
        %1127 = vmatprep.subr.mxu0 0.0
        %1128 = vmatpush1.msra.mxu0 0.0
        %1129 = vmatprep.subr.mxu0 0.0
        %1130 = vmatpush1.msra.mxu0 0.0
        %1131 = vmatprep.subr.mxu0 0.0
        %1132 = vmatpush1.msra.mxu0 0.0
        %1133 = vmatprep.subr.mxu0 0.0
        %1134 = vmatpush1.msra.mxu0 0.0
        %1135 = vmatprep.subr.mxu0 0.0
        %1136 = vmatpush1.msra.mxu0 0.0
        %1137 = vmatprep.subr.mxu0 0.0
        %1138 = vmatpush1.msra.mxu0 0.0
        %1139 = vmatprep.subr.mxu0 0.0
        %1140 = vmatpush1.msra.mxu0 0.0
        %1141 = vmatprep.subr.mxu0 0.0
        %1142 = vmatpush1.msra.mxu0 0.0
        %1143 = vmatprep.subr.mxu0 0.0
        %1144 = vmatpush1.msra.mxu0 0.0
        %1145 = vmatprep.subr.mxu0 0.0
        %1146 = vmatpush1.msra.mxu0 0.0
        %1147 = vmatprep.subr.mxu0 0.0
        %1148 = vmatpush1.msra.mxu0 0.0
        %1149 = vmatprep.subr.mxu0 0.0
        %1150 = vmatpush1.msra.mxu0 0.0
        %1151 = vmatprep.subr.mxu0 0.0
        %1152 = vmatpush1.msra.mxu0 0.0
        %1153 = vmatprep.subr.mxu0 0.0
        %1154 = vmatpush1.msra.mxu0 0.0
        %1155 = vmatprep.subr.mxu0 0.0
        %1156 = vmatpush1.msra.mxu0 0.0
        %1157 = vmatprep.subr.mxu0 0.0
        %1158 = vmatpush1.msra.mxu0 0.0
        %1159 = vmatprep.subr.mxu0 0.0
        %1160 = vmatpush1.msra.mxu0 0.0
        %1161 = vmatprep.subr.mxu0 0.0
        %1162 = vmatpush1.msra.mxu0 0.0
        %1163 = vmatprep.subr.mxu0 0.0
        %1164 = vmatpush1.msra.mxu0 0.0
        %1165 = vmatprep.subr.mxu0 0.0
        %1166 = vmatpush1.msra.mxu0 0.0
        %1167 = vmatprep.subr.mxu0 0.0
        %1168 = vmatpush1.msra.mxu0 0.0
        %1169 = vmatprep.subr.mxu0 0.0
        %1170 = vmatpush1.msra.mxu0 0.0
        %1171 = vmatprep.subr.mxu0 0.0
        %1172 = vmatpush1.msra.mxu0 0.0
        %1173 = vmatprep.subr.mxu0 0.0
        %1174 = vmatpush1.msra.mxu0 0.0
        %1175 = vmatprep.subr.mxu0 0.0
        %1176 = vmatpush1.msra.mxu0 0.0
        %1177 = vmatprep.subr.mxu0 0.0
        %1178 = vmatpush1.msra.mxu0 0.0
        %1179 = vmatprep.subr.mxu0 0.0
        %1180 = vmatpush1.msra.mxu0 0.0
        %1181 = vmatprep.subr.mxu0 0.0
        %1182 = vmatpush1.msra.mxu0 0.0
        %1183 = vmatprep.mubr.f32.mxu0 0.0
        %1184 = vmatmul.mubr.f32.gmra.mrb[0].mxu0 %v1117
        %v1185 = vpop.f32.mrb[0].mxu0
        %v1186 = vadd.f32 0.0, %v1185
        %v1187 = vpop.f32.mrb[0].mxu0
        %1188 = vdwg.mxu0
        %1189 = vst.msk [vmem:[#allocation2] sm:$0xff] %vm866, %v1113
        %1190 = vst.msk [vmem:[#allocation2 + $0x8] sm:$0xff] %vm866, %v1186
        %1191 = vrot.lane.b32.xlu0 %v680, 120
        %v1192 = vpop.permute.xlu0 %1191
        %1193 = vrot.lane.b32.xlu0 %v766, 120
        %v1194 = vpop.permute.xlu0 %1193
        %v1195 = vsel %vm866, %v1192, 0
        %v1197 = vsel %vm866, %v1194, 0
        %1199 = vmatprep.subr.mxu0 0.0
        %1200 = vmatpush1.xpose.msra.mxu0 %v1197
        %1201 = vmatprep.subr.mxu0 0.0
        %1202 = vmatpush1.xpose.msra.mxu0 0.0
        %1203 = vmatprep.subr.mxu0 0.0
        %1204 = vmatpush1.xpose.msra.mxu0 0.0
        %1205 = vmatprep.subr.mxu0 0.0
        %1206 = vmatpush1.xpose.msra.mxu0 0.0
        %1207 = vmatprep.subr.mxu0 0.0
        %1208 = vmatpush1.xpose.msra.mxu0 0.0
        %1209 = vmatprep.subr.mxu0 0.0
        %1210 = vmatpush1.xpose.msra.mxu0 0.0
        %1211 = vmatprep.subr.mxu0 0.0
        %1212 = vmatpush1.xpose.msra.mxu0 0.0
        %1213 = vmatprep.subr.mxu0 0.0
        %1214 = vmatpush1.xpose.msra.mxu0 0.0
        %1215 = vmatprep.subr.mxu0 0.0
        %1216 = vmatpush1.xpose.msra.mxu0 0.0
        %1217 = vmatprep.subr.mxu0 0.0
        %1218 = vmatpush1.xpose.msra.mxu0 0.0
        %1219 = vmatprep.subr.mxu0 0.0
        %1220 = vmatpush1.xpose.msra.mxu0 0.0
        %1221 = vmatprep.subr.mxu0 0.0
        %1222 = vmatpush1.xpose.msra.mxu0 0.0
        %1223 = vmatprep.subr.mxu0 0.0
        %1224 = vmatpush1.xpose.msra.mxu0 0.0
        %1225 = vmatprep.subr.mxu0 0.0
        %1226 = vmatpush1.xpose.msra.mxu0 0.0
        %1227 = vmatprep.subr.mxu0 0.0
        %1228 = vmatpush1.xpose.msra.mxu0 0.0
        %1229 = vmatprep.subr.mxu0 0.0
        %1230 = vmatpush1.xpose.msra.mxu0 0.0
        %1231 = vmatprep.subr.mxu0 0.0
        %1232 = vmatpush1.xpose.msra.mxu0 0.0
        %1233 = vmatprep.subr.mxu0 0.0
        %1234 = vmatpush1.xpose.msra.mxu0 0.0
        %1235 = vmatprep.subr.mxu0 0.0
        %1236 = vmatpush1.xpose.msra.mxu0 0.0
        %1237 = vmatprep.subr.mxu0 0.0
        %1238 = vmatpush1.xpose.msra.mxu0 0.0
        %1239 = vmatprep.subr.mxu0 0.0
        %1240 = vmatpush1.xpose.msra.mxu0 0.0
        %1241 = vmatprep.subr.mxu0 0.0
        %1242 = vmatpush1.xpose.msra.mxu0 0.0
        %1243 = vmatprep.subr.mxu0 0.0
        %1244 = vmatpush1.xpose.msra.mxu0 0.0
        %1245 = vmatprep.subr.mxu0 0.0
        %1246 = vmatpush1.xpose.msra.mxu0 0.0
        %1247 = vmatprep.subr.mxu0 0.0
        %1248 = vmatpush1.xpose.msra.mxu0 0.0
        %1249 = vmatprep.subr.mxu0 0.0
        %1250 = vmatpush1.xpose.msra.mxu0 0.0
        %1251 = vmatprep.subr.mxu0 0.0
        %1252 = vmatpush1.xpose.msra.mxu0 0.0
        %1253 = vmatprep.subr.mxu0 0.0
        %1254 = vmatpush1.xpose.msra.mxu0 0.0
        %1255 = vmatprep.subr.mxu0 0.0
        %1256 = vmatpush1.xpose.msra.mxu0 0.0
        %1257 = vmatprep.subr.mxu0 0.0
        %1258 = vmatpush1.xpose.msra.mxu0 0.0
        %1259 = vmatprep.subr.mxu0 0.0
        %1260 = vmatpush1.xpose.msra.mxu0 0.0
        %1261 = vmatprep.subr.mxu0 0.0
        %1262 = vmatpush1.xpose.msra.mxu0 0.0
        %1263 = vmatprep.mubr.f32.mxu0 0.0
        %1264 = vmatmul.mubr.f32.gmra.mrb[0].mxu0 %v1195
        %v1265 = vpop.f32.mrb[0].mxu0
        %v1266 = vadd.f32 0.0, %v1265
        %v1267 = vpop.f32.mrb[0].mxu0
        %1268 = vdwg.mxu0
        %1269 = vrot.lane.b32.xlu0 %v681, 120
        %v1270 = vpop.permute.xlu0 %1269
        %1271 = vrot.lane.b32.xlu0 %v771, 120
        %v1272 = vpop.permute.xlu0 %1271
        %v1273 = vsel %vm866, %v1270, 0
        %v1275 = vsel %vm866, %v1272, 0
        %1277 = vmatprep.subr.mxu0 0.0
        %1278 = vmatpush1.xpose.msra.mxu0 %v1275
        %1279 = vmatprep.subr.mxu0 0.0
        %1280 = vmatpush1.xpose.msra.mxu0 0.0
        %1281 = vmatprep.subr.mxu0 0.0
        %1282 = vmatpush1.xpose.msra.mxu0 0.0
        %1283 = vmatprep.subr.mxu0 0.0
        %1284 = vmatpush1.xpose.msra.mxu0 0.0
        %1285 = vmatprep.subr.mxu0 0.0
        %1286 = vmatpush1.xpose.msra.mxu0 0.0
        %1287 = vmatprep.subr.mxu0 0.0
        %1288 = vmatpush1.xpose.msra.mxu0 0.0
        %1289 = vmatprep.subr.mxu0 0.0
        %1290 = vmatpush1.xpose.msra.mxu0 0.0
        %1291 = vmatprep.subr.mxu0 0.0
        %1292 = vmatpush1.xpose.msra.mxu0 0.0
        %1293 = vmatprep.subr.mxu0 0.0
        %1294 = vmatpush1.xpose.msra.mxu0 0.0
        %1295 = vmatprep.subr.mxu0 0.0
        %1296 = vmatpush1.xpose.msra.mxu0 0.0
        %1297 = vmatprep.subr.mxu0 0.0
        %1298 = vmatpush1.xpose.msra.mxu0 0.0
        %1299 = vmatprep.subr.mxu0 0.0
        %1300 = vmatpush1.xpose.msra.mxu0 0.0
        %1301 = vmatprep.subr.mxu0 0.0
        %1302 = vmatpush1.xpose.msra.mxu0 0.0
        %1303 = vmatprep.subr.mxu0 0.0
        %1304 = vmatpush1.xpose.msra.mxu0 0.0
        %1305 = vmatprep.subr.mxu0 0.0
        %1306 = vmatpush1.xpose.msra.mxu0 0.0
        %1307 = vmatprep.subr.mxu0 0.0
        %1308 = vmatpush1.xpose.msra.mxu0 0.0
        %1309 = vmatprep.subr.mxu0 0.0
        %1310 = vmatpush1.xpose.msra.mxu0 0.0
        %1311 = vmatprep.subr.mxu0 0.0
        %1312 = vmatpush1.xpose.msra.mxu0 0.0
        %1313 = vmatprep.subr.mxu0 0.0
        %1314 = vmatpush1.xpose.msra.mxu0 0.0
        %1315 = vmatprep.subr.mxu0 0.0
        %1316 = vmatpush1.xpose.msra.mxu0 0.0
        %1317 = vmatprep.subr.mxu0 0.0
        %1318 = vmatpush1.xpose.msra.mxu0 0.0
        %1319 = vmatprep.subr.mxu0 0.0
        %1320 = vmatpush1.xpose.msra.mxu0 0.0
        %1321 = vmatprep.subr.mxu0 0.0
        %1322 = vmatpush1.xpose.msra.mxu0 0.0
        %1323 = vmatprep.subr.mxu0 0.0
        %1324 = vmatpush1.xpose.msra.mxu0 0.0
        %1325 = vmatprep.subr.mxu0 0.0
        %1326 = vmatpush1.xpose.msra.mxu0 0.0
        %1327 = vmatprep.subr.mxu0 0.0
        %1328 = vmatpush1.xpose.msra.mxu0 0.0
        %1329 = vmatprep.subr.mxu0 0.0
        %1330 = vmatpush1.xpose.msra.mxu0 0.0
        %1331 = vmatprep.subr.mxu0 0.0
        %1332 = vmatpush1.xpose.msra.mxu0 0.0
        %1333 = vmatprep.subr.mxu0 0.0
        %1334 = vmatpush1.xpose.msra.mxu0 0.0
        %1335 = vmatprep.subr.mxu0 0.0
        %1336 = vmatpush1.xpose.msra.mxu0 0.0
        %1337 = vmatprep.subr.mxu0 0.0
        %1338 = vmatpush1.xpose.msra.mxu0 0.0
        %1339 = vmatprep.subr.mxu0 0.0
        %1340 = vmatpush1.xpose.msra.mxu0 0.0
        %1341 = vmatprep.mubr.f32.mxu0 0.0
        %1342 = vmatmul.mubr.f32.gmra.mrb[0].mxu0 %v1273
        %v1343 = vpop.f32.mrb[0].mxu0
        %v1344 = vadd.f32 0.0, %v1343
        %v1345 = vpop.f32.mrb[0].mxu0
        %1346 = vdwg.mxu0
        %v1347 = vsel %vm866, %v1266, -inf
        %1348 = vmax.xlane.f32.xlu0 %v1347
        %v1349 = vpop.xlane.xlu0 %1348
        %v1350 = vsel %vm866, %v1344, -inf
        %1351 = vmax.xlane.f32.xlu0 %v1350
        %v1352 = vpop.xlane.xlu0 %1351
        %v1353 = vsub.f32 %v1266, %v1349
        %v1354 = vsub.f32 %v1344, %v1352
        %v1355 = vmul.f32 %v1353, 1.442695
        %v1356 = vpow.pop %v1355
        %v1357 = vmul.f32 %v1354, 1.442695
        %v1358 = vpow.pop %v1357
        %v1359 = vsel %vm866, %v1356, 0.0
        %1360 = vadd.xlane.f32.xlu0 %v1359
        %v1361 = vpop.xlane.xlu0 %1360
        %v1362 = vsel %vm866, %v1358, 0.0
        %1363 = vadd.xlane.f32.xlu0 %v1362
        %v1364 = vpop.xlane.xlu0 %1363
        %v1365 = vrcp.pop %v1361
        %v1366 = vrcp.pop %v1364
        %v1367 = vmul.f32 %v1356, %v1365
        %v1368 = vmul.f32 %v1358, %v1366
        %s1369 = scalar_lea.vmem %s575, 8 [#allocation16]
        %1370 = vst.msk [vmem:[%s1369] sm:$0xff] %vm866, %v1367
        %1371 = vst.msk [vmem:[%s1369 + $0x20] sm:$0xff] %vm866, %v1368
        %1373 = vrot.lane.b32.xlu0 %v858, 120
        %v1374 = vpop.permute.xlu0 %1373
        %v1377 = vsel %vm866, %v1367, 0
        %1379 = vmatprep.subr.mxu0 0.0
        %1380 = vmatpush1.msra.mxu0 %v1374
        %1381 = vmatprep.subr.mxu0 0.0
        %1382 = vmatpush1.msra.mxu0 0.0
        %1383 = vmatprep.subr.mxu0 0.0
        %1384 = vmatpush1.msra.mxu0 0.0
        %1385 = vmatprep.subr.mxu0 0.0
        %1386 = vmatpush1.msra.mxu0 0.0
        %1387 = vmatprep.subr.mxu0 0.0
        %1388 = vmatpush1.msra.mxu0 0.0
        %1389 = vmatprep.subr.mxu0 0.0
        %1390 = vmatpush1.msra.mxu0 0.0
        %1391 = vmatprep.subr.mxu0 0.0
        %1392 = vmatpush1.msra.mxu0 0.0
        %1393 = vmatprep.subr.mxu0 0.0
        %1394 = vmatpush1.msra.mxu0 0.0
        %1395 = vmatprep.subr.mxu0 0.0
        %1396 = vmatpush1.msra.mxu0 0.0
        %1397 = vmatprep.subr.mxu0 0.0
        %1398 = vmatpush1.msra.mxu0 0.0
        %1399 = vmatprep.subr.mxu0 0.0
        %1400 = vmatpush1.msra.mxu0 0.0
        %1401 = vmatprep.subr.mxu0 0.0
        %1402 = vmatpush1.msra.mxu0 0.0
        %1403 = vmatprep.subr.mxu0 0.0
        %1404 = vmatpush1.msra.mxu0 0.0
        %1405 = vmatprep.subr.mxu0 0.0
        %1406 = vmatpush1.msra.mxu0 0.0
        %1407 = vmatprep.subr.mxu0 0.0
        %1408 = vmatpush1.msra.mxu0 0.0
        %1409 = vmatprep.subr.mxu0 0.0
        %1410 = vmatpush1.msra.mxu0 0.0
        %1411 = vmatprep.subr.mxu0 0.0
        %1412 = vmatpush1.msra.mxu0 0.0
        %1413 = vmatprep.subr.mxu0 0.0
        %1414 = vmatpush1.msra.mxu0 0.0
        %1415 = vmatprep.subr.mxu0 0.0
        %1416 = vmatpush1.msra.mxu0 0.0
        %1417 = vmatprep.subr.mxu0 0.0
        %1418 = vmatpush1.msra.mxu0 0.0
        %1419 = vmatprep.subr.mxu0 0.0
        %1420 = vmatpush1.msra.mxu0 0.0
        %1421 = vmatprep.subr.mxu0 0.0
        %1422 = vmatpush1.msra.mxu0 0.0
        %1423 = vmatprep.subr.mxu0 0.0
        %1424 = vmatpush1.msra.mxu0 0.0
        %1425 = vmatprep.subr.mxu0 0.0
        %1426 = vmatpush1.msra.mxu0 0.0
        %1427 = vmatprep.subr.mxu0 0.0
        %1428 = vmatpush1.msra.mxu0 0.0
        %1429 = vmatprep.subr.mxu0 0.0
        %1430 = vmatpush1.msra.mxu0 0.0
        %1431 = vmatprep.subr.mxu0 0.0
        %1432 = vmatpush1.msra.mxu0 0.0
        %1433 = vmatprep.subr.mxu0 0.0
        %1434 = vmatpush1.msra.mxu0 0.0
        %1435 = vmatprep.subr.mxu0 0.0
        %1436 = vmatpush1.msra.mxu0 0.0
        %1437 = vmatprep.subr.mxu0 0.0
        %1438 = vmatpush1.msra.mxu0 0.0
        %1439 = vmatprep.subr.mxu0 0.0
        %1440 = vmatpush1.msra.mxu0 0.0
        %1441 = vmatprep.subr.mxu0 0.0
        %1442 = vmatpush1.msra.mxu0 0.0
        %1443 = vmatprep.mubr.f32.mxu0 0.0
        %1444 = vmatmul.mubr.f32.gmra.mrb[0].mxu0 %v1377
        %v1445 = vpop.f32.mrb[0].mxu0
        %v1446 = vadd.f32 0.0, %v1445
        %v1447 = vpop.f32.mrb[0].mxu0
        %1448 = vdwg.mxu0
        %1450 = vrot.lane.b32.xlu0 %v863, 120
        %v1451 = vpop.permute.xlu0 %1450
        %v1454 = vsel %vm866, %v1368, 0
        %1456 = vmatprep.subr.mxu0 0.0
        %1457 = vmatpush1.msra.mxu0 %v1451
        %1458 = vmatprep.subr.mxu0 0.0
        %1459 = vmatpush1.msra.mxu0 0.0
        %1460 = vmatprep.subr.mxu0 0.0
        %1461 = vmatpush1.msra.mxu0 0.0
        %1462 = vmatprep.subr.mxu0 0.0
        %1463 = vmatpush1.msra.mxu0 0.0
        %1464 = vmatprep.subr.mxu0 0.0
        %1465 = vmatpush1.msra.mxu0 0.0
        %1466 = vmatprep.subr.mxu0 0.0
        %1467 = vmatpush1.msra.mxu0 0.0
        %1468 = vmatprep.subr.mxu0 0.0
        %1469 = vmatpush1.msra.mxu0 0.0
        %1470 = vmatprep.subr.mxu0 0.0
        %1471 = vmatpush1.msra.mxu0 0.0
        %1472 = vmatprep.subr.mxu0 0.0
        %1473 = vmatpush1.msra.mxu0 0.0
        %1474 = vmatprep.subr.mxu0 0.0
        %1475 = vmatpush1.msra.mxu0 0.0
        %1476 = vmatprep.subr.mxu0 0.0
        %1477 = vmatpush1.msra.mxu0 0.0
        %1478 = vmatprep.subr.mxu0 0.0
        %1479 = vmatpush1.msra.mxu0 0.0
        %1480 = vmatprep.subr.mxu0 0.0
        %1481 = vmatpush1.msra.mxu0 0.0
        %1482 = vmatprep.subr.mxu0 0.0
        %1483 = vmatpush1.msra.mxu0 0.0
        %1484 = vmatprep.subr.mxu0 0.0
        %1485 = vmatpush1.msra.mxu0 0.0
        %1486 = vmatprep.subr.mxu0 0.0
        %1487 = vmatpush1.msra.mxu0 0.0
        %1488 = vmatprep.subr.mxu0 0.0
        %1489 = vmatpush1.msra.mxu0 0.0
        %1490 = vmatprep.subr.mxu0 0.0
        %1491 = vmatpush1.msra.mxu0 0.0
        %1492 = vmatprep.subr.mxu0 0.0
        %1493 = vmatpush1.msra.mxu0 0.0
        %1494 = vmatprep.subr.mxu0 0.0
        %1495 = vmatpush1.msra.mxu0 0.0
        %1496 = vmatprep.subr.mxu0 0.0
        %1497 = vmatpush1.msra.mxu0 0.0
        %1498 = vmatprep.subr.mxu0 0.0
        %1499 = vmatpush1.msra.mxu0 0.0
        %1500 = vmatprep.subr.mxu0 0.0
        %1501 = vmatpush1.msra.mxu0 0.0
        %1502 = vmatprep.subr.mxu0 0.0
        %1503 = vmatpush1.msra.mxu0 0.0
        %1504 = vmatprep.subr.mxu0 0.0
        %1505 = vmatpush1.msra.mxu0 0.0
        %1506 = vmatprep.subr.mxu0 0.0
        %1507 = vmatpush1.msra.mxu0 0.0
        %1508 = vmatprep.subr.mxu0 0.0
        %1509 = vmatpush1.msra.mxu0 0.0
        %1510 = vmatprep.subr.mxu0 0.0
        %1511 = vmatpush1.msra.mxu0 0.0
        %1512 = vmatprep.subr.mxu0 0.0
        %1513 = vmatpush1.msra.mxu0 0.0
        %1514 = vmatprep.subr.mxu0 0.0
        %1515 = vmatpush1.msra.mxu0 0.0
        %1516 = vmatprep.subr.mxu0 0.0
        %1517 = vmatpush1.msra.mxu0 0.0
        %1518 = vmatprep.subr.mxu0 0.0
        %1519 = vmatpush1.msra.mxu0 0.0
        %1520 = vmatprep.mubr.f32.mxu0 0.0
        %1521 = vmatmul.mubr.f32.gmra.mrb[0].mxu0 %v1454
        %v1522 = vpop.f32.mrb[0].mxu0
        %v1523 = vadd.f32 0.0, %v1522
        %v1524 = vpop.f32.mrb[0].mxu0
        %1525 = vdwg.mxu0
        %1528 = vrot.lane.b32.xlu0 %v1446, 8
        %v1529 = vpop.permute.xlu0 %1528
        %1530 = vrot.lane.b32.xlu0 %v1523, 8
        %v1531 = vpop.permute.xlu0 %1530
        %vm1534 = vcmask 130112
        %1535 = vst.msk [vmem:[#allocation2] sm:$0xff] %vm1534, %v1529
        %1536 = vst.msk [vmem:[#allocation2 + $0x8] sm:$0xff] %vm1534, %v1531
        %1537 = vrot.lane.b32.xlu0 %v680, 112
        %v1538 = vpop.permute.xlu0 %1537
        %1539 = vrot.lane.b32.xlu0 %v766, 112
        %v1540 = vpop.permute.xlu0 %1539
        %v1541 = vsel %vm866, %v1538, 0
        %v1543 = vsel %vm866, %v1540, 0
        %1545 = vmatprep.subr.mxu0 0.0
        %1546 = vmatpush1.xpose.msra.mxu0 %v1543
        %1547 = vmatprep.subr.mxu0 0.0
        %1548 = vmatpush1.xpose.msra.mxu0 0.0
        %1549 = vmatprep.subr.mxu0 0.0
        %1550 = vmatpush1.xpose.msra.mxu0 0.0
        %1551 = vmatprep.subr.mxu0 0.0
        %1552 = vmatpush1.xpose.msra.mxu0 0.0
        %1553 = vmatprep.subr.mxu0 0.0
        %1554 = vmatpush1.xpose.msra.mxu0 0.0
        %1555 = vmatprep.subr.mxu0 0.0
        %1556 = vmatpush1.xpose.msra.mxu0 0.0
        %1557 = vmatprep.subr.mxu0 0.0
        %1558 = vmatpush1.xpose.msra.mxu0 0.0
        %1559 = vmatprep.subr.mxu0 0.0
        %1560 = vmatpush1.xpose.msra.mxu0 0.0
        %1561 = vmatprep.subr.mxu0 0.0
        %1562 = vmatpush1.xpose.msra.mxu0 0.0
        %1563 = vmatprep.subr.mxu0 0.0
        %1564 = vmatpush1.xpose.msra.mxu0 0.0
        %1565 = vmatprep.subr.mxu0 0.0
        %1566 = vmatpush1.xpose.msra.mxu0 0.0
        %1567 = vmatprep.subr.mxu0 0.0
        %1568 = vmatpush1.xpose.msra.mxu0 0.0
        %1569 = vmatprep.subr.mxu0 0.0
        %1570 = vmatpush1.xpose.msra.mxu0 0.0
        %1571 = vmatprep.subr.mxu0 0.0
        %1572 = vmatpush1.xpose.msra.mxu0 0.0
        %1573 = vmatprep.subr.mxu0 0.0
        %1574 = vmatpush1.xpose.msra.mxu0 0.0
        %1575 = vmatprep.subr.mxu0 0.0
        %1576 = vmatpush1.xpose.msra.mxu0 0.0
        %1577 = vmatprep.subr.mxu0 0.0
        %1578 = vmatpush1.xpose.msra.mxu0 0.0
        %1579 = vmatprep.subr.mxu0 0.0
        %1580 = vmatpush1.xpose.msra.mxu0 0.0
        %1581 = vmatprep.subr.mxu0 0.0
        %1582 = vmatpush1.xpose.msra.mxu0 0.0
        %1583 = vmatprep.subr.mxu0 0.0
        %1584 = vmatpush1.xpose.msra.mxu0 0.0
        %1585 = vmatprep.subr.mxu0 0.0
        %1586 = vmatpush1.xpose.msra.mxu0 0.0
        %1587 = vmatprep.subr.mxu0 0.0
        %1588 = vmatpush1.xpose.msra.mxu0 0.0
        %1589 = vmatprep.subr.mxu0 0.0
        %1590 = vmatpush1.xpose.msra.mxu0 0.0
        %1591 = vmatprep.subr.mxu0 0.0
        %1592 = vmatpush1.xpose.msra.mxu0 0.0
        %1593 = vmatprep.subr.mxu0 0.0
        %1594 = vmatpush1.xpose.msra.mxu0 0.0
        %1595 = vmatprep.subr.mxu0 0.0
        %1596 = vmatpush1.xpose.msra.mxu0 0.0
        %1597 = vmatprep.subr.mxu0 0.0
        %1598 = vmatpush1.xpose.msra.mxu0 0.0
        %1599 = vmatprep.subr.mxu0 0.0
        %1600 = vmatpush1.xpose.msra.mxu0 0.0
        %1601 = vmatprep.subr.mxu0 0.0
        %1602 = vmatpush1.xpose.msra.mxu0 0.0
        %1603 = vmatprep.subr.mxu0 0.0
        %1604 = vmatpush1.xpose.msra.mxu0 0.0
        %1605 = vmatprep.subr.mxu0 0.0
        %1606 = vmatpush1.xpose.msra.mxu0 0.0
        %1607 = vmatprep.subr.mxu0 0.0
        %1608 = vmatpush1.xpose.msra.mxu0 0.0
        %1609 = vmatprep.mubr.f32.mxu0 0.0
        %1610 = vmatmul.mubr.f32.gmra.mrb[0].mxu0 %v1541
        %v1611 = vpop.f32.mrb[0].mxu0
        %v1612 = vadd.f32 0.0, %v1611
        %v1613 = vpop.f32.mrb[0].mxu0
        %1614 = vdwg.mxu0
        %1615 = vrot.lane.b32.xlu0 %v681, 112
        %v1616 = vpop.permute.xlu0 %1615
        %1617 = vrot.lane.b32.xlu0 %v771, 112
        %v1618 = vpop.permute.xlu0 %1617
        %v1619 = vsel %vm866, %v1616, 0
        %v1621 = vsel %vm866, %v1618, 0
        %1623 = vmatprep.subr.mxu0 0.0
        %1624 = vmatpush1.xpose.msra.mxu0 %v1621
        %1625 = vmatprep.subr.mxu0 0.0
        %1626 = vmatpush1.xpose.msra.mxu0 0.0
        %1627 = vmatprep.subr.mxu0 0.0
        %1628 = vmatpush1.xpose.msra.mxu0 0.0
        %1629 = vmatprep.subr.mxu0 0.0
        %1630 = vmatpush1.xpose.msra.mxu0 0.0
        %1631 = vmatprep.subr.mxu0 0.0
        %1632 = vmatpush1.xpose.msra.mxu0 0.0
        %1633 = vmatprep.subr.mxu0 0.0
        %1634 = vmatpush1.xpose.msra.mxu0 0.0
        %1635 = vmatprep.subr.mxu0 0.0
        %1636 = vmatpush1.xpose.msra.mxu0 0.0
        %1637 = vmatprep.subr.mxu0 0.0
        %1638 = vmatpush1.xpose.msra.mxu0 0.0
        %1639 = vmatprep.subr.mxu0 0.0
        %1640 = vmatpush1.xpose.msra.mxu0 0.0
        %1641 = vmatprep.subr.mxu0 0.0
        %1642 = vmatpush1.xpose.msra.mxu0 0.0
        %1643 = vmatprep.subr.mxu0 0.0
        %1644 = vmatpush1.xpose.msra.mxu0 0.0
        %1645 = vmatprep.subr.mxu0 0.0
        %1646 = vmatpush1.xpose.msra.mxu0 0.0
        %1647 = vmatprep.subr.mxu0 0.0
        %1648 = vmatpush1.xpose.msra.mxu0 0.0
        %1649 = vmatprep.subr.mxu0 0.0
        %1650 = vmatpush1.xpose.msra.mxu0 0.0
        %1651 = vmatprep.subr.mxu0 0.0
        %1652 = vmatpush1.xpose.msra.mxu0 0.0
        %1653 = vmatprep.subr.mxu0 0.0
        %1654 = vmatpush1.xpose.msra.mxu0 0.0
        %1655 = vmatprep.subr.mxu0 0.0
        %1656 = vmatpush1.xpose.msra.mxu0 0.0
        %1657 = vmatprep.subr.mxu0 0.0
        %1658 = vmatpush1.xpose.msra.mxu0 0.0
        %1659 = vmatprep.subr.mxu0 0.0
        %1660 = vmatpush1.xpose.msra.mxu0 0.0
        %1661 = vmatprep.subr.mxu0 0.0
        %1662 = vmatpush1.xpose.msra.mxu0 0.0
        %1663 = vmatprep.subr.mxu0 0.0
        %1664 = vmatpush1.xpose.msra.mxu0 0.0
        %1665 = vmatprep.subr.mxu0 0.0
        %1666 = vmatpush1.xpose.msra.mxu0 0.0
        %1667 = vmatprep.subr.mxu0 0.0
        %1668 = vmatpush1.xpose.msra.mxu0 0.0
        %1669 = vmatprep.subr.mxu0 0.0
        %1670 = vmatpush1.xpose.msra.mxu0 0.0
        %1671 = vmatprep.subr.mxu0 0.0
        %1672 = vmatpush1.xpose.msra.mxu0 0.0
        %1673 = vmatprep.subr.mxu0 0.0
        %1674 = vmatpush1.xpose.msra.mxu0 0.0
        %1675 = vmatprep.subr.mxu0 0.0
        %1676 = vmatpush1.xpose.msra.mxu0 0.0
        %1677 = vmatprep.subr.mxu0 0.0
        %1678 = vmatpush1.xpose.msra.mxu0 0.0
        %1679 = vmatprep.subr.mxu0 0.0
        %1680 = vmatpush1.xpose.msra.mxu0 0.0
        %1681 = vmatprep.subr.mxu0 0.0
        %1682 = vmatpush1.xpose.msra.mxu0 0.0
        %1683 = vmatprep.subr.mxu0 0.0
        %1684 = vmatpush1.xpose.msra.mxu0 0.0
        %1685 = vmatprep.subr.mxu0 0.0
        %1686 = vmatpush1.xpose.msra.mxu0 0.0
        %1687 = vmatprep.mubr.f32.mxu0 0.0
        %1688 = vmatmul.mubr.f32.gmra.mrb[0].mxu0 %v1619
        %v1689 = vpop.f32.mrb[0].mxu0
        %v1690 = vadd.f32 0.0, %v1689
        %v1691 = vpop.f32.mrb[0].mxu0
        %1692 = vdwg.mxu0
        %v1693 = vsel %vm866, %v1612, -inf
        %1694 = vmax.xlane.f32.xlu0 %v1693
        %v1695 = vpop.xlane.xlu0 %1694
        %v1696 = vsel %vm866, %v1690, -inf
        %1697 = vmax.xlane.f32.xlu0 %v1696
        %v1698 = vpop.xlane.xlu0 %1697
        %v1699 = vsub.f32 %v1612, %v1695
        %v1700 = vsub.f32 %v1690, %v1698
        %v1701 = vmul.f32 %v1699, 1.442695
        %v1702 = vpow.pop %v1701
        %v1703 = vmul.f32 %v1700, 1.442695
        %v1704 = vpow.pop %v1703
        %v1705 = vsel %vm866, %v1702, 0.0
        %1706 = vadd.xlane.f32.xlu0 %v1705
        %v1707 = vpop.xlane.xlu0 %1706
        %v1708 = vsel %vm866, %v1704, 0.0
        %1709 = vadd.xlane.f32.xlu0 %v1708
        %v1710 = vpop.xlane.xlu0 %1709
        %v1711 = vrcp.pop %v1707
        %v1712 = vrcp.pop %v1710
        %v1713 = vmul.f32 %v1702, %v1711
        %v1714 = vmul.f32 %v1704, %v1712
        %s1715 = scalar_lea.vmem %s575, 16 [#allocation16]
        %1716 = vst.msk [vmem:[%s1715] sm:$0xff] %vm866, %v1713
        %1717 = vst.msk [vmem:[%s1715 + $0x20] sm:$0xff] %vm866, %v1714
        %1718 = vrot.lane.b32.xlu0 %v858, 112
        %v1719 = vpop.permute.xlu0 %1718
        %v1722 = vsel %vm866, %v1713, 0
        %1724 = vmatprep.subr.mxu0 0.0
        %1725 = vmatpush1.msra.mxu0 %v1719
        %1726 = vmatprep.subr.mxu0 0.0
        %1727 = vmatpush1.msra.mxu0 0.0
        %1728 = vmatprep.subr.mxu0 0.0
        %1729 = vmatpush1.msra.mxu0 0.0
        %1730 = vmatprep.subr.mxu0 0.0
        %1731 = vmatpush1.msra.mxu0 0.0
        %1732 = vmatprep.subr.mxu0 0.0
        %1733 = vmatpush1.msra.mxu0 0.0
        %1734 = vmatprep.subr.mxu0 0.0
        %1735 = vmatpush1.msra.mxu0 0.0
        %1736 = vmatprep.subr.mxu0 0.0
        %1737 = vmatpush1.msra.mxu0 0.0
        %1738 = vmatprep.subr.mxu0 0.0
        %1739 = vmatpush1.msra.mxu0 0.0
        %1740 = vmatprep.subr.mxu0 0.0
        %1741 = vmatpush1.msra.mxu0 0.0
        %1742 = vmatprep.subr.mxu0 0.0
        %1743 = vmatpush1.msra.mxu0 0.0
        %1744 = vmatprep.subr.mxu0 0.0
        %1745 = vmatpush1.msra.mxu0 0.0
        %1746 = vmatprep.subr.mxu0 0.0
        %1747 = vmatpush1.msra.mxu0 0.0
        %1748 = vmatprep.subr.mxu0 0.0
        %1749 = vmatpush1.msra.mxu0 0.0
        %1750 = vmatprep.subr.mxu0 0.0
        %1751 = vmatpush1.msra.mxu0 0.0
        %1752 = vmatprep.subr.mxu0 0.0
        %1753 = vmatpush1.msra.mxu0 0.0
        %1754 = vmatprep.subr.mxu0 0.0
        %1755 = vmatpush1.msra.mxu0 0.0
        %1756 = vmatprep.subr.mxu0 0.0
        %1757 = vmatpush1.msra.mxu0 0.0
        %1758 = vmatprep.subr.mxu0 0.0
        %1759 = vmatpush1.msra.mxu0 0.0
        %1760 = vmatprep.subr.mxu0 0.0
        %1761 = vmatpush1.msra.mxu0 0.0
        %1762 = vmatprep.subr.mxu0 0.0
        %1763 = vmatpush1.msra.mxu0 0.0
        %1764 = vmatprep.subr.mxu0 0.0
        %1765 = vmatpush1.msra.mxu0 0.0
        %1766 = vmatprep.subr.mxu0 0.0
        %1767 = vmatpush1.msra.mxu0 0.0
        %1768 = vmatprep.subr.mxu0 0.0
        %1769 = vmatpush1.msra.mxu0 0.0
        %1770 = vmatprep.subr.mxu0 0.0
        %1771 = vmatpush1.msra.mxu0 0.0
        %1772 = vmatprep.subr.mxu0 0.0
        %1773 = vmatpush1.msra.mxu0 0.0
        %1774 = vmatprep.subr.mxu0 0.0
        %1775 = vmatpush1.msra.mxu0 0.0
        %1776 = vmatprep.subr.mxu0 0.0
        %1777 = vmatpush1.msra.mxu0 0.0
        %1778 = vmatprep.subr.mxu0 0.0
        %1779 = vmatpush1.msra.mxu0 0.0
        %1780 = vmatprep.subr.mxu0 0.0
        %1781 = vmatpush1.msra.mxu0 0.0
        %1782 = vmatprep.subr.mxu0 0.0
        %1783 = vmatpush1.msra.mxu0 0.0
        %1784 = vmatprep.subr.mxu0 0.0
        %1785 = vmatpush1.msra.mxu0 0.0
        %1786 = vmatprep.subr.mxu0 0.0
        %1787 = vmatpush1.msra.mxu0 0.0
        %1788 = vmatprep.mubr.f32.mxu0 0.0
        %1789 = vmatmul.mubr.f32.gmra.mrb[0].mxu0 %v1722
        %v1790 = vpop.f32.mrb[0].mxu0
        %v1791 = vadd.f32 0.0, %v1790
        %v1792 = vpop.f32.mrb[0].mxu0
        %1793 = vdwg.mxu0
        %1794 = vrot.lane.b32.xlu0 %v863, 112
        %v1795 = vpop.permute.xlu0 %1794
        %v1798 = vsel %vm866, %v1714, 0
        %1800 = vmatprep.subr.mxu0 0.0
        %1801 = vmatpush1.msra.mxu0 %v1795
        %1802 = vmatprep.subr.mxu0 0.0
        %1803 = vmatpush1.msra.mxu0 0.0
        %1804 = vmatprep.subr.mxu0 0.0
        %1805 = vmatpush1.msra.mxu0 0.0
        %1806 = vmatprep.subr.mxu0 0.0
        %1807 = vmatpush1.msra.mxu0 0.0
        %1808 = vmatprep.subr.mxu0 0.0
        %1809 = vmatpush1.msra.mxu0 0.0
        %1810 = vmatprep.subr.mxu0 0.0
        %1811 = vmatpush1.msra.mxu0 0.0
        %1812 = vmatprep.subr.mxu0 0.0
        %1813 = vmatpush1.msra.mxu0 0.0
        %1814 = vmatprep.subr.mxu0 0.0
        %1815 = vmatpush1.msra.mxu0 0.0
        %1816 = vmatprep.subr.mxu0 0.0
        %1817 = vmatpush1.msra.mxu0 0.0
        %1818 = vmatprep.subr.mxu0 0.0
        %1819 = vmatpush1.msra.mxu0 0.0
        %1820 = vmatprep.subr.mxu0 0.0
        %1821 = vmatpush1.msra.mxu0 0.0
        %1822 = vmatprep.subr.mxu0 0.0
        %1823 = vmatpush1.msra.mxu0 0.0
        %1824 = vmatprep.subr.mxu0 0.0
        %1825 = vmatpush1.msra.mxu0 0.0
        %1826 = vmatprep.subr.mxu0 0.0
        %1827 = vmatpush1.msra.mxu0 0.0
        %1828 = vmatprep.subr.mxu0 0.0
        %1829 = vmatpush1.msra.mxu0 0.0
        %1830 = vmatprep.subr.mxu0 0.0
        %1831 = vmatpush1.msra.mxu0 0.0
        %1832 = vmatprep.subr.mxu0 0.0
        %1833 = vmatpush1.msra.mxu0 0.0
        %1834 = vmatprep.subr.mxu0 0.0
        %1835 = vmatpush1.msra.mxu0 0.0
        %1836 = vmatprep.subr.mxu0 0.0
        %1837 = vmatpush1.msra.mxu0 0.0
        %1838 = vmatprep.subr.mxu0 0.0
        %1839 = vmatpush1.msra.mxu0 0.0
        %1840 = vmatprep.subr.mxu0 0.0
        %1841 = vmatpush1.msra.mxu0 0.0
        %1842 = vmatprep.subr.mxu0 0.0
        %1843 = vmatpush1.msra.mxu0 0.0
        %1844 = vmatprep.subr.mxu0 0.0
        %1845 = vmatpush1.msra.mxu0 0.0
        %1846 = vmatprep.subr.mxu0 0.0
        %1847 = vmatpush1.msra.mxu0 0.0
        %1848 = vmatprep.subr.mxu0 0.0
        %1849 = vmatpush1.msra.mxu0 0.0
        %1850 = vmatprep.subr.mxu0 0.0
        %1851 = vmatpush1.msra.mxu0 0.0
        %1852 = vmatprep.subr.mxu0 0.0
        %1853 = vmatpush1.msra.mxu0 0.0
        %1854 = vmatprep.subr.mxu0 0.0
        %1855 = vmatpush1.msra.mxu0 0.0
        %1856 = vmatprep.subr.mxu0 0.0
        %1857 = vmatpush1.msra.mxu0 0.0
        %1858 = vmatprep.subr.mxu0 0.0
        %1859 = vmatpush1.msra.mxu0 0.0
        %1860 = vmatprep.subr.mxu0 0.0
        %1861 = vmatpush1.msra.mxu0 0.0
        %1862 = vmatprep.subr.mxu0 0.0
        %1863 = vmatpush1.msra.mxu0 0.0
        %1864 = vmatprep.mubr.f32.mxu0 0.0
        %1865 = vmatmul.mubr.f32.gmra.mrb[0].mxu0 %v1798
        %v1866 = vpop.f32.mrb[0].mxu0
        %v1867 = vadd.f32 0.0, %v1866
        %v1868 = vpop.f32.mrb[0].mxu0
        %1869 = vdwg.mxu0
        %1872 = vrot.lane.b32.xlu0 %v1791, 16
        %v1873 = vpop.permute.xlu0 %1872
        %1874 = vrot.lane.b32.xlu0 %v1867, 16
        %v1875 = vpop.permute.xlu0 %1874
        %vm1878 = vcmask 195712
        %1879 = vst.msk [vmem:[#allocation2] sm:$0xff] %vm1878, %v1873
        %1880 = vst.msk [vmem:[#allocation2 + $0x8] sm:$0xff] %vm1878, %v1875
        %1881 = vrot.lane.b32.xlu0 %v680, 104
        %v1882 = vpop.permute.xlu0 %1881
        %1883 = vrot.lane.b32.xlu0 %v766, 104
        %v1884 = vpop.permute.xlu0 %1883
        %v1885 = vsel %vm866, %v1882, 0
        %v1887 = vsel %vm866, %v1884, 0
        %1889 = vmatprep.subr.mxu0 0.0
        %1890 = vmatpush1.xpose.msra.mxu0 %v1887
        %1891 = vmatprep.subr.mxu0 0.0
        %1892 = vmatpush1.xpose.msra.mxu0 0.0
        %1893 = vmatprep.subr.mxu0 0.0
        %1894 = vmatpush1.xpose.msra.mxu0 0.0
        %1895 = vmatprep.subr.mxu0 0.0
        %1896 = vmatpush1.xpose.msra.mxu0 0.0
        %1897 = vmatprep.subr.mxu0 0.0
        %1898 = vmatpush1.xpose.msra.mxu0 0.0
        %1899 = vmatprep.subr.mxu0 0.0
        %1900 = vmatpush1.xpose.msra.mxu0 0.0
        %1901 = vmatprep.subr.mxu0 0.0
        %1902 = vmatpush1.xpose.msra.mxu0 0.0
        %1903 = vmatprep.subr.mxu0 0.0
        %1904 = vmatpush1.xpose.msra.mxu0 0.0
        %1905 = vmatprep.subr.mxu0 0.0
        %1906 = vmatpush1.xpose.msra.mxu0 0.0
        %1907 = vmatprep.subr.mxu0 0.0
        %1908 = vmatpush1.xpose.msra.mxu0 0.0
        %1909 = vmatprep.subr.mxu0 0.0
        %1910 = vmatpush1.xpose.msra.mxu0 0.0
        %1911 = vmatprep.subr.mxu0 0.0
        %1912 = vmatpush1.xpose.msra.mxu0 0.0
        %1913 = vmatprep.subr.mxu0 0.0
        %1914 = vmatpush1.xpose.msra.mxu0 0.0
        %1915 = vmatprep.subr.mxu0 0.0
        %1916 = vmatpush1.xpose.msra.mxu0 0.0
        %1917 = vmatprep.subr.mxu0 0.0
        %1918 = vmatpush1.xpose.msra.mxu0 0.0
        %1919 = vmatprep.subr.mxu0 0.0
        %1920 = vmatpush1.xpose.msra.mxu0 0.0
        %1921 = vmatprep.subr.mxu0 0.0
        %1922 = vmatpush1.xpose.msra.mxu0 0.0
        %1923 = vmatprep.subr.mxu0 0.0
        %1924 = vmatpush1.xpose.msra.mxu0 0.0
        %1925 = vmatprep.subr.mxu0 0.0
        %1926 = vmatpush1.xpose.msra.mxu0 0.0
        %1927 = vmatprep.subr.mxu0 0.0
        %1928 = vmatpush1.xpose.msra.mxu0 0.0
        %1929 = vmatprep.subr.mxu0 0.0
        %1930 = vmatpush1.xpose.msra.mxu0 0.0
        %1931 = vmatprep.subr.mxu0 0.0
        %1932 = vmatpush1.xpose.msra.mxu0 0.0
        %1933 = vmatprep.subr.mxu0 0.0
        %1934 = vmatpush1.xpose.msra.mxu0 0.0
        %1935 = vmatprep.subr.mxu0 0.0
        %1936 = vmatpush1.xpose.msra.mxu0 0.0
        %1937 = vmatprep.subr.mxu0 0.0
        %1938 = vmatpush1.xpose.msra.mxu0 0.0
        %1939 = vmatprep.subr.mxu0 0.0
        %1940 = vmatpush1.xpose.msra.mxu0 0.0
        %1941 = vmatprep.subr.mxu0 0.0
        %1942 = vmatpush1.xpose.msra.mxu0 0.0
        %1943 = vmatprep.subr.mxu0 0.0
        %1944 = vmatpush1.xpose.msra.mxu0 0.0
        %1945 = vmatprep.subr.mxu0 0.0
        %1946 = vmatpush1.xpose.msra.mxu0 0.0
        %1947 = vmatprep.subr.mxu0 0.0
        %1948 = vmatpush1.xpose.msra.mxu0 0.0
        %1949 = vmatprep.subr.mxu0 0.0
        %1950 = vmatpush1.xpose.msra.mxu0 0.0
        %1951 = vmatprep.subr.mxu0 0.0
        %1952 = vmatpush1.xpose.msra.mxu0 0.0
        %1953 = vmatprep.mubr.f32.mxu0 0.0
        %1954 = vmatmul.mubr.f32.gmra.mrb[0].mxu0 %v1885
        %v1955 = vpop.f32.mrb[0].mxu0
        %v1956 = vadd.f32 0.0, %v1955
        %v1957 = vpop.f32.mrb[0].mxu0
        %1958 = vdwg.mxu0
        %1959 = vrot.lane.b32.xlu0 %v681, 104
        %v1960 = vpop.permute.xlu0 %1959
        %1961 = vrot.lane.b32.xlu0 %v771, 104
        %v1962 = vpop.permute.xlu0 %1961
        %v1963 = vsel %vm866, %v1960, 0
        %v1965 = vsel %vm866, %v1962, 0
        %1967 = vmatprep.subr.mxu0 0.0
        %1968 = vmatpush1.xpose.msra.mxu0 %v1965
        %1969 = vmatprep.subr.mxu0 0.0
        %1970 = vmatpush1.xpose.msra.mxu0 0.0
        %1971 = vmatprep.subr.mxu0 0.0
        %1972 = vmatpush1.xpose.msra.mxu0 0.0
        %1973 = vmatprep.subr.mxu0 0.0
        %1974 = vmatpush1.xpose.msra.mxu0 0.0
        %1975 = vmatprep.subr.mxu0 0.0
        %1976 = vmatpush1.xpose.msra.mxu0 0.0
        %1977 = vmatprep.subr.mxu0 0.0
        %1978 = vmatpush1.xpose.msra.mxu0 0.0
        %1979 = vmatprep.subr.mxu0 0.0
        %1980 = vmatpush1.xpose.msra.mxu0 0.0
        %1981 = vmatprep.subr.mxu0 0.0
        %1982 = vmatpush1.xpose.msra.mxu0 0.0
        %1983 = vmatprep.subr.mxu0 0.0
        %1984 = vmatpush1.xpose.msra.mxu0 0.0
        %1985 = vmatprep.subr.mxu0 0.0
        %1986 = vmatpush1.xpose.msra.mxu0 0.0
        %1987 = vmatprep.subr.mxu0 0.0
        %1988 = vmatpush1.xpose.msra.mxu0 0.0
        %1989 = vmatprep.subr.mxu0 0.0
        %1990 = vmatpush1.xpose.msra.mxu0 0.0
        %1991 = vmatprep.subr.mxu0 0.0
        %1992 = vmatpush1.xpose.msra.mxu0 0.0
        %1993 = vmatprep.subr.mxu0 0.0
        %1994 = vmatpush1.xpose.msra.mxu0 0.0
        %1995 = vmatprep.subr.mxu0 0.0
        %1996 = vmatpush1.xpose.msra.mxu0 0.0
        %1997 = vmatprep.subr.mxu0 0.0
        %1998 = vmatpush1.xpose.msra.mxu0 0.0
        %1999 = vmatprep.subr.mxu0 0.0
        %2000 = vmatpush1.xpose.msra.mxu0 0.0
        %2001 = vmatprep.subr.mxu0 0.0
        %2002 = vmatpush1.xpose.msra.mxu0 0.0
        %2003 = vmatprep.subr.mxu0 0.0
        %2004 = vmatpush1.xpose.msra.mxu0 0.0
        %2005 = vmatprep.subr.mxu0 0.0
        %2006 = vmatpush1.xpose.msra.mxu0 0.0
        %2007 = vmatprep.subr.mxu0 0.0
        %2008 = vmatpush1.xpose.msra.mxu0 0.0
        %2009 = vmatprep.subr.mxu0 0.0
        %2010 = vmatpush1.xpose.msra.mxu0 0.0
        %2011 = vmatprep.subr.mxu0 0.0
        %2012 = vmatpush1.xpose.msra.mxu0 0.0
        %2013 = vmatprep.subr.mxu0 0.0
        %2014 = vmatpush1.xpose.msra.mxu0 0.0
        %2015 = vmatprep.subr.mxu0 0.0
        %2016 = vmatpush1.xpose.msra.mxu0 0.0
        %2017 = vmatprep.subr.mxu0 0.0
        %2018 = vmatpush1.xpose.msra.mxu0 0.0
        %2019 = vmatprep.subr.mxu0 0.0
        %2020 = vmatpush1.xpose.msra.mxu0 0.0
        %2021 = vmatprep.subr.mxu0 0.0
        %2022 = vmatpush1.xpose.msra.mxu0 0.0
        %2023 = vmatprep.subr.mxu0 0.0
        %2024 = vmatpush1.xpose.msra.mxu0 0.0
        %2025 = vmatprep.subr.mxu0 0.0
        %2026 = vmatpush1.xpose.msra.mxu0 0.0
        %2027 = vmatprep.subr.mxu0 0.0
        %2028 = vmatpush1.xpose.msra.mxu0 0.0
        %2029 = vmatprep.subr.mxu0 0.0
        %2030 = vmatpush1.xpose.msra.mxu0 0.0
        %2031 = vmatprep.mubr.f32.mxu0 0.0
        %2032 = vmatmul.mubr.f32.gmra.mrb[0].mxu0 %v1963
        %v2033 = vpop.f32.mrb[0].mxu0
        %v2034 = vadd.f32 0.0, %v2033
        %v2035 = vpop.f32.mrb[0].mxu0
        %2036 = vdwg.mxu0
        %v2037 = vsel %vm866, %v1956, -inf
        %2038 = vmax.xlane.f32.xlu0 %v2037
        %v2039 = vpop.xlane.xlu0 %2038
        %v2040 = vsel %vm866, %v2034, -inf
        %2041 = vmax.xlane.f32.xlu0 %v2040
        %v2042 = vpop.xlane.xlu0 %2041
        %v2043 = vsub.f32 %v1956, %v2039
        %v2044 = vsub.f32 %v2034, %v2042
        %v2045 = vmul.f32 %v2043, 1.442695
        %v2046 = vpow.pop %v2045
        %v2047 = vmul.f32 %v2044, 1.442695
        %v2048 = vpow.pop %v2047
        %v2049 = vsel %vm866, %v2046, 0.0
        %2050 = vadd.xlane.f32.xlu0 %v2049
        %v2051 = vpop.xlane.xlu0 %2050
        %v2052 = vsel %vm866, %v2048, 0.0
        %2053 = vadd.xlane.f32.xlu0 %v2052
        %v2054 = vpop.xlane.xlu0 %2053
        %v2055 = vrcp.pop %v2051
        %v2056 = vrcp.pop %v2054
        %v2057 = vmul.f32 %v2046, %v2055
        %v2058 = vmul.f32 %v2048, %v2056
        %s2059 = scalar_lea.vmem %s575, 24 [#allocation16]
        %2060 = vst.msk [vmem:[%s2059] sm:$0xff] %vm866, %v2057
        %2061 = vst.msk [vmem:[%s2059 + $0x20] sm:$0xff] %vm866, %v2058
        %2062 = vrot.lane.b32.xlu0 %v858, 104
        %v2063 = vpop.permute.xlu0 %2062
        %v2066 = vsel %vm866, %v2057, 0
        %2068 = vmatprep.subr.mxu0 0.0
        %2069 = vmatpush1.msra.mxu0 %v2063
        %2070 = vmatprep.subr.mxu0 0.0
        %2071 = vmatpush1.msra.mxu0 0.0
        %2072 = vmatprep.subr.mxu0 0.0
        %2073 = vmatpush1.msra.mxu0 0.0
        %2074 = vmatprep.subr.mxu0 0.0
        %2075 = vmatpush1.msra.mxu0 0.0
        %2076 = vmatprep.subr.mxu0 0.0
        %2077 = vmatpush1.msra.mxu0 0.0
        %2078 = vmatprep.subr.mxu0 0.0
        %2079 = vmatpush1.msra.mxu0 0.0
        %2080 = vmatprep.subr.mxu0 0.0
        %2081 = vmatpush1.msra.mxu0 0.0
        %2082 = vmatprep.subr.mxu0 0.0
        %2083 = vmatpush1.msra.mxu0 0.0
        %2084 = vmatprep.subr.mxu0 0.0
        %2085 = vmatpush1.msra.mxu0 0.0
        %2086 = vmatprep.subr.mxu0 0.0
        %2087 = vmatpush1.msra.mxu0 0.0
        %2088 = vmatprep.subr.mxu0 0.0
        %2089 = vmatpush1.msra.mxu0 0.0
        %2090 = vmatprep.subr.mxu0 0.0
        %2091 = vmatpush1.msra.mxu0 0.0
        %2092 = vmatprep.subr.mxu0 0.0
        %2093 = vmatpush1.msra.mxu0 0.0
        %2094 = vmatprep.subr.mxu0 0.0
        %2095 = vmatpush1.msra.mxu0 0.0
        %2096 = vmatprep.subr.mxu0 0.0
        %2097 = vmatpush1.msra.mxu0 0.0
        %2098 = vmatprep.subr.mxu0 0.0
        %2099 = vmatpush1.msra.mxu0 0.0
        %2100 = vmatprep.subr.mxu0 0.0
        %2101 = vmatpush1.msra.mxu0 0.0
        %2102 = vmatprep.subr.mxu0 0.0
        %2103 = vmatpush1.msra.mxu0 0.0
        %2104 = vmatprep.subr.mxu0 0.0
        %2105 = vmatpush1.msra.mxu0 0.0
        %2106 = vmatprep.subr.mxu0 0.0
        %2107 = vmatpush1.msra.mxu0 0.0
        %2108 = vmatprep.subr.mxu0 0.0
        %2109 = vmatpush1.msra.mxu0 0.0
        %2110 = vmatprep.subr.mxu0 0.0
        %2111 = vmatpush1.msra.mxu0 0.0
        %2112 = vmatprep.subr.mxu0 0.0
        %2113 = vmatpush1.msra.mxu0 0.0
        %2114 = vmatprep.subr.mxu0 0.0
        %2115 = vmatpush1.msra.mxu0 0.0
        %2116 = vmatprep.subr.mxu0 0.0
        %2117 = vmatpush1.msra.mxu0 0.0
        %2118 = vmatprep.subr.mxu0 0.0
        %2119 = vmatpush1.msra.mxu0 0.0
        %2120 = vmatprep.subr.mxu0 0.0
        %2121 = vmatpush1.msra.mxu0 0.0
        %2122 = vmatprep.subr.mxu0 0.0
        %2123 = vmatpush1.msra.mxu0 0.0
        %2124 = vmatprep.subr.mxu0 0.0
        %2125 = vmatpush1.msra.mxu0 0.0
        %2126 = vmatprep.subr.mxu0 0.0
        %2127 = vmatpush1.msra.mxu0 0.0
        %2128 = vmatprep.subr.mxu0 0.0
        %2129 = vmatpush1.msra.mxu0 0.0
        %2130 = vmatprep.subr.mxu0 0.0
        %2131 = vmatpush1.msra.mxu0 0.0
        %2132 = vmatprep.mubr.f32.mxu0 0.0
        %2133 = vmatmul.mubr.f32.gmra.mrb[0].mxu0 %v2066
        %v2134 = vpop.f32.mrb[0].mxu0
        %v2135 = vadd.f32 0.0, %v2134
        %v2136 = vpop.f32.mrb[0].mxu0
        %2137 = vdwg.mxu0
        %2138 = vrot.lane.b32.xlu0 %v863, 104
        %v2139 = vpop.permute.xlu0 %2138
        %v2142 = vsel %vm866, %v2058, 0
        %2144 = vmatprep.subr.mxu0 0.0
        %2145 = vmatpush1.msra.mxu0 %v2139
        %2146 = vmatprep.subr.mxu0 0.0
        %2147 = vmatpush1.msra.mxu0 0.0
        %2148 = vmatprep.subr.mxu0 0.0
        %2149 = vmatpush1.msra.mxu0 0.0
        %2150 = vmatprep.subr.mxu0 0.0
        %2151 = vmatpush1.msra.mxu0 0.0
        %2152 = vmatprep.subr.mxu0 0.0
        %2153 = vmatpush1.msra.mxu0 0.0
        %2154 = vmatprep.subr.mxu0 0.0
        %2155 = vmatpush1.msra.mxu0 0.0
        %2156 = vmatprep.subr.mxu0 0.0
        %2157 = vmatpush1.msra.mxu0 0.0
        %2158 = vmatprep.subr.mxu0 0.0
        %2159 = vmatpush1.msra.mxu0 0.0
        %2160 = vmatprep.subr.mxu0 0.0
        %2161 = vmatpush1.msra.mxu0 0.0
        %2162 = vmatprep.subr.mxu0 0.0
        %2163 = vmatpush1.msra.mxu0 0.0
        %2164 = vmatprep.subr.mxu0 0.0
        %2165 = vmatpush1.msra.mxu0 0.0
        %2166 = vmatprep.subr.mxu0 0.0
        %2167 = vmatpush1.msra.mxu0 0.0
        %2168 = vmatprep.subr.mxu0 0.0
        %2169 = vmatpush1.msra.mxu0 0.0
        %2170 = vmatprep.subr.mxu0 0.0
        %2171 = vmatpush1.msra.mxu0 0.0
        %2172 = vmatprep.subr.mxu0 0.0
        %2173 = vmatpush1.msra.mxu0 0.0
        %2174 = vmatprep.subr.mxu0 0.0
        %2175 = vmatpush1.msra.mxu0 0.0
        %2176 = vmatprep.subr.mxu0 0.0
        %2177 = vmatpush1.msra.mxu0 0.0
        %2178 = vmatprep.subr.mxu0 0.0
        %2179 = vmatpush1.msra.mxu0 0.0
        %2180 = vmatprep.subr.mxu0 0.0
        %2181 = vmatpush1.msra.mxu0 0.0
        %2182 = vmatprep.subr.mxu0 0.0
        %2183 = vmatpush1.msra.mxu0 0.0
        %2184 = vmatprep.subr.mxu0 0.0
        %2185 = vmatpush1.msra.mxu0 0.0
        %2186 = vmatprep.subr.mxu0 0.0
        %2187 = vmatpush1.msra.mxu0 0.0
        %2188 = vmatprep.subr.mxu0 0.0
        %2189 = vmatpush1.msra.mxu0 0.0
        %2190 = vmatprep.subr.mxu0 0.0
        %2191 = vmatpush1.msra.mxu0 0.0
        %2192 = vmatprep.subr.mxu0 0.0
        %2193 = vmatpush1.msra.mxu0 0.0
        %2194 = vmatprep.subr.mxu0 0.0
        %2195 = vmatpush1.msra.mxu0 0.0
        %2196 = vmatprep.subr.mxu0 0.0
        %2197 = vmatpush1.msra.mxu0 0.0
        %2198 = vmatprep.subr.mxu0 0.0
        %2199 = vmatpush1.msra.mxu0 0.0
        %2200 = vmatprep.subr.mxu0 0.0
        %2201 = vmatpush1.msra.mxu0 0.0
        %2202 = vmatprep.subr.mxu0 0.0
        %2203 = vmatpush1.msra.mxu0 0.0
        %2204 = vmatprep.subr.mxu0 0.0
        %2205 = vmatpush1.msra.mxu0 0.0
        %2206 = vmatprep.subr.mxu0 0.0
        %2207 = vmatpush1.msra.mxu0 0.0
        %2208 = vmatprep.mubr.f32.mxu0 0.0
        %2209 = vmatmul.mubr.f32.gmra.mrb[0].mxu0 %v2142
        %v2210 = vpop.f32.mrb[0].mxu0
        %v2211 = vadd.f32 0.0, %v2210
        %v2212 = vpop.f32.mrb[0].mxu0
        %2213 = vdwg.mxu0
        %2216 = vrot.lane.b32.xlu0 %v2135, 24
        %v2217 = vpop.permute.xlu0 %2216
        %2218 = vrot.lane.b32.xlu0 %v2211, 24
        %v2219 = vpop.permute.xlu0 %2218
        %vm2222 = vcmask 261312
        %2223 = vst.msk [vmem:[#allocation2] sm:$0xff] %vm2222, %v2217
        %2224 = vst.msk [vmem:[#allocation2 + $0x8] sm:$0xff] %vm2222, %v2219
        %v2225 = vld [vmem:[#allocation2] sm:$0xff]
        %v2226 = vld [vmem:[#allocation2 + $0x8] sm:$0xff]
        %v2227 = vld [vmem:[%s9] sm:$0xff]
        %v2228 = vld [vmem:[%s9 + $0x8] sm:$0xff]
        %v2229 = vld [vmem:[%s9 + $0x10] sm:$0xff]
        %v2230 = vld [vmem:[%s9 + $0x18] sm:$0xff]
        %v2231 = vld [vmem:[%s10] sm:$0x1]
        %v2233 = vlaneseq
        %v2234 = vshrl.u32 %v2233, 7
        %v2235 = vsub.s32 0, %v2234
        %v2236 = vrot.slane %v2231, %v2235
        %v2239 = vsel %vm598, %v2225, 0
        %v2242 = vsel %vm598, %v2226, 0
        %2244 = vmatprep.subr.mxu0 0.0
        %2245 = vmatpush1.msra.mxu0 %v2227
        %2246 = vmatprep.subr.mxu0 0.0
        %2247 = vmatpush1.msra.mxu0 %v2228
        %2248 = vmatprep.subr.mxu0 0.0
        %2249 = vmatpush1.msra.mxu0 %v2229
        %2250 = vmatprep.subr.mxu0 0.0
        %2251 = vmatpush1.msra.mxu0 %v2230
        %2252 = vmatprep.subr.mxu0 0.0
        %2253 = vmatpush1.msra.mxu0 0.0
        %2254 = vmatprep.subr.mxu0 0.0
        %2255 = vmatpush1.msra.mxu0 0.0
        %2256 = vmatprep.subr.mxu0 0.0
        %2257 = vmatpush1.msra.mxu0 0.0
        %2258 = vmatprep.subr.mxu0 0.0
        %2259 = vmatpush1.msra.mxu0 0.0
        %2260 = vmatprep.subr.mxu0 0.0
        %2261 = vmatpush1.msra.mxu0 0.0
        %2262 = vmatprep.subr.mxu0 0.0
        %2263 = vmatpush1.msra.mxu0 0.0
        %2264 = vmatprep.subr.mxu0 0.0
        %2265 = vmatpush1.msra.mxu0 0.0
        %2266 = vmatprep.subr.mxu0 0.0
        %2267 = vmatpush1.msra.mxu0 0.0
        %2268 = vmatprep.subr.mxu0 0.0
        %2269 = vmatpush1.msra.mxu0 0.0
        %2270 = vmatprep.subr.mxu0 0.0
        %2271 = vmatpush1.msra.mxu0 0.0
        %2272 = vmatprep.subr.mxu0 0.0
        %2273 = vmatpush1.msra.mxu0 0.0
        %2274 = vmatprep.subr.mxu0 0.0
        %2275 = vmatpush1.msra.mxu0 0.0
        %2276 = vmatprep.subr.mxu0 0.0
        %2277 = vmatpush1.msra.mxu0 0.0
        %2278 = vmatprep.subr.mxu0 0.0
        %2279 = vmatpush1.msra.mxu0 0.0
        %2280 = vmatprep.subr.mxu0 0.0
        %2281 = vmatpush1.msra.mxu0 0.0
        %2282 = vmatprep.subr.mxu0 0.0
        %2283 = vmatpush1.msra.mxu0 0.0
        %2284 = vmatprep.subr.mxu0 0.0
        %2285 = vmatpush1.msra.mxu0 0.0
        %2286 = vmatprep.subr.mxu0 0.0
        %2287 = vmatpush1.msra.mxu0 0.0
        %2288 = vmatprep.subr.mxu0 0.0
        %2289 = vmatpush1.msra.mxu0 0.0
        %2290 = vmatprep.subr.mxu0 0.0
        %2291 = vmatpush1.msra.mxu0 0.0
        %2292 = vmatprep.subr.mxu0 0.0
        %2293 = vmatpush1.msra.mxu0 0.0
        %2294 = vmatprep.subr.mxu0 0.0
        %2295 = vmatpush1.msra.mxu0 0.0
        %2296 = vmatprep.subr.mxu0 0.0
        %2297 = vmatpush1.msra.mxu0 0.0
        %2298 = vmatprep.subr.mxu0 0.0
        %2299 = vmatpush1.msra.mxu0 0.0
        %2300 = vmatprep.subr.mxu0 0.0
        %2301 = vmatpush1.msra.mxu0 0.0
        %2302 = vmatprep.subr.mxu0 0.0
        %2303 = vmatpush1.msra.mxu0 0.0
        %2304 = vmatprep.subr.mxu0 0.0
        %2305 = vmatpush1.msra.mxu0 0.0
        %2306 = vmatprep.subr.mxu0 0.0
        %2307 = vmatpush1.msra.mxu0 0.0
        %2308 = vmatprep.mubr.f32.mxu0 0.0
        %2309 = vmatmul.mubr.f32.gmra.mrb[0].mxu0 %v2239
        %v2310 = vpop.f32.mrb[0].mxu0
        %v2311 = vadd.f32 %v2236, %v2310
        %v2312 = vpop.f32.mrb[0].mxu0
        %2313 = vmatprep.mubr.f32.mxu0 0.0
        %2314 = vmatmul.mubr.f32.gmra.mrb[0].mxu0 %v2242
        %v2315 = vpop.f32.mrb[0].mxu0
        %v2316 = vadd.f32 %v2236, %v2315
        %v2317 = vpop.f32.mrb[0].mxu0
        %2318 = vdwg.mxu0
        %2319 = vst.msk [vmem:[%s568] sm:$0xff] %vm598, %v2311
        %2320 = vst.msk [vmem:[%s568 + $0x8] sm:$0xff] %vm598, %v2316
        %s2321 = sand.u32 %s292, 1
        %s2322 = scalar_lea.sflag [#allocation5], %s2321
        %s2323 = sand.u32 %s292, 1
        %s2324 = smul.addr %s2323, 16
        %s2325 = scalar_lea.vmem [#allocation15], %s2324
        %s2326 = sand.u32 %s318, 1
        %s2327 = scalar_lea.sflag [#allocation17], %s2326
        %s2328 = sand.u32 %s318, 1
        %s2329 = smul.addr %s2328, 64
        %s2330 = scalar_lea.vmem [#allocation16], %s2329
        // Predicated region
        $region93: #{tpu_custom_call.1} parent=63 // pred_check
          %p2331 = pneg %p302
        $region94: #{tpu_custom_call.1} parent=63 // pred_check_branch
          %2333 = sbr.rel (%p2331) target = $region96
        $region95: #{tpu_custom_call.1} parent=63 // pred_region
          %s2334 = smul.u32 2, %s38
          %s2336 = ssub.s32 256, 256
          %2337 = vsyncadd %s2322, %s2336
          %s2338 = smul.addr %s2334, 128
          %s2339 = scalar_lea.hbm %s11, %s2338
          %s2340 = sshll.u32 %s2325, 4
          %s2341 = int_to_ptr.vmem [resolvable:$true] %s2340
          %2346 = dma.vmem_to_hbm [thread:$0]  %s2341, 256, %s2339, %s2322, 128, 128, 8
        $region96: #{tpu_custom_call.1} parent=63 // pred_fallthru
          _
        // Predicated region
        $region97: #{tpu_custom_call.1} parent=63 // pred_check
          %p2347 = pneg %p328
        $region98: #{tpu_custom_call.1} parent=63 // pred_check_branch
          %2349 = sbr.rel (%p2347) target = $region100
        $region99: #{tpu_custom_call.1} parent=63 // pred_region
          %s2350 = smul.u32 2, %s38
          %s2352 = ssub.s32 1024, 1024
          %2353 = vsyncadd %s2327, %s2352
          %s2354 = smul.addr %s2350, 4
          %s2355 = smul.addr %s2354, 128
          %s2356 = scalar_lea.hbm %s12, %s2355
          %s2357 = sshll.u32 %s2330, 4
          %s2358 = int_to_ptr.vmem [resolvable:$true] %s2357
          %2363 = dma.vmem_to_hbm [thread:$0]  %s2358, 1024, %s2356, %s2327, 128, 128, 8
        $region100: #{tpu_custom_call.1} parent=63 // pred_fallthru
          _
      $region64: #{tpu_custom_call.1} parent=5 // pred_fallthru
        _
      %p2364 = scmp.le.s32.totalorder 2, %s33
      // Predicated region
      $region101: #{tpu_custom_call.1} parent=5 // pred_check
        %p2365 = pneg %p2364
      $region102: #{tpu_custom_call.1} parent=5 // pred_check_branch
        %2367 = sbr.rel (%p2365) target = $region104
      $region103: #{tpu_custom_call.1} parent=5 // pred_region
        %s2368 = ssub.s32 %s33, 2
        // Predicated region
        $region105: #{tpu_custom_call.1} parent=103 // pred_check
          %p2369 = pneg %p308
        $region106: #{tpu_custom_call.1} parent=103 // pred_check_branch
          %2371 = sbr.rel (%p2369) target = $region108
        $region107: #{tpu_custom_call.1} parent=103 // pred_region
          %s2372 = sand.u32 %s293, 1
          %s2373 = scalar_lea.sflag [#allocation5], %s2372
          %s2374 = sand.u32 %s293, 1
          %s2375 = smul.addr %s2374, 16
          %s2376 = scalar_lea.vmem [#allocation15], %s2375
          %2377 = dma.done %s2373, 256
        $region108: #{tpu_custom_call.1} parent=103 // pred_fallthru
          _
        // Predicated region
        $region109: #{tpu_custom_call.1} parent=103 // pred_check
          %p2378 = pneg %p334
        $region110: #{tpu_custom_call.1} parent=103 // pred_check_branch
          %2380 = sbr.rel (%p2378) target = $region112
        $region111: #{tpu_custom_call.1} parent=103 // pred_region
          %s2381 = sand.u32 %s319, 1
          %s2382 = scalar_lea.sflag [#allocation17], %s2381
          %s2383 = sand.u32 %s319, 1
          %s2384 = smul.addr %s2383, 64
          %s2385 = scalar_lea.vmem [#allocation16], %s2384
          %2386 = dma.done %s2382, 1024
        $region112: #{tpu_custom_call.1} parent=103 // pred_fallthru
          _
      $region104: #{tpu_custom_call.1} parent=5 // pred_fallthru
        _
    $region6: #{tpu_custom_call.1} parent=1 // loop_footer
      %s37 = sadd.s32 1, %s33
    $region7: #{tpu_custom_call.1} parent=1 // loop_footer_branch
      %32 = sbr.rel target = $region3
    $region8: #{tpu_custom_call.1} parent=1 // loop_exit
      _
    %2387 = vsyncpa [#allocation4], 1
    %s2388 = scalar_lea.sflag [#allocation4], 1
    %2389 = vsyncpa %s2388, 1
    %2390 = vsyncpa [#allocation7], 1
    %s2391 = scalar_lea.sflag [#allocation7], 1
    %2392 = vsyncpa %s2391, 1
    %2393 = vsyncpa [#allocation10], 1
    %2394 = vsyncpa [#allocation13], 1
    %2395 = vsyncpa [#allocation5], 1
    %s2396 = scalar_lea.sflag [#allocation5], 1
    %2397 = vsyncpa %s2396, 1
    %2398 = vsyncpa [#allocation17], 1
    %s2399 = scalar_lea.sflag [#allocation17], 1
    %2400 = vsyncpa %s2399, 1

</llo_original>
